<compile_context>
chip_gen: v7x
topology: tpu7x:2x2x1
jax: 0.10.0
libtpu: 0.0.40
codegen_flags: <defaults>
</compile_context>

<pallas_src>
import functools

import jax
import jax.numpy as jnp
from jax.experimental import pallas as pl
from jax.experimental.pallas import tpu as pltpu

_LN_EPS = 1e-5  # torch.nn.LayerNorm default


# ----------------------------------------------------------------------------
# Kernel
# ----------------------------------------------------------------------------
def _ee_block_kernel(x_ref, g_ref, bt_ref, w1_ref, b1_ref, w2_ref, b2_ref,
                     logit_ref, prob_ref, acc_ref, corr_ref,
                     *, num_classes, seq_len):
    """One (batch-tile, seq-tile) grid step of EarlyExitBlock.

    x_ref:   (TB, TS, P)  token features (possibly zero-padded rows/tokens)
    g_ref:   (1, P)       LayerNorm weight      bt_ref: (1, P)  LayerNorm bias
    w1_ref:  (P, Hp)      fc1 weight (in,out)   b1_ref: (1, Hp) fc1 bias (padded)
    w2_ref:  (Hp, Cp)     fc2 weight (in,out)   b2_ref: (1, Cp) fc2 bias (padded)
    logit_ref, prob_ref: (TB, Cp) outputs (first num_classes lanes valid)
    acc_ref:  (TB, P) f32 scratch — running sum over seq of x_t * rsqrt_t
    corr_ref: (TB, 1) f32 scratch — running sum over seq of mean_t * rsqrt_t
    """
    s_idx = pl.program_id(1)

    @pl.when(s_idx == 0)
    def _init():
        acc_ref[...] = jnp.zeros_like(acc_ref)
        corr_ref[...] = jnp.zeros_like(corr_ref)

    # One-pass LN statistics in f32; all-zero (padded) tokens contribute 0.
    x = x_ref[...].astype(jnp.float32)                       # [TB, TS, P]
    inv_p = 1.0 / x.shape[-1]
    sum_x = jnp.sum(x, axis=-1, keepdims=True)               # [TB, TS, 1]
    sum_x2 = jnp.sum(x * x, axis=-1, keepdims=True)          # [TB, TS, 1]
    mean = sum_x * inv_p
    var = jnp.maximum(sum_x2 * inv_p - mean * mean, 0.0)     # biased (torch)
    r = jax.lax.rsqrt(var + _LN_EPS)                         # [TB, TS, 1]
    acc_ref[...] += jnp.sum(x * r, axis=1)                   # [TB, P]
    corr_ref[...] += jnp.sum(mean * r, axis=1)                # [TB, 1]

    @pl.when(s_idx == pl.num_programs(1) - 1)
    def _finalize():
        # sum_t (x_t - mean_t) * r_t == acc - corr ; divide by true seq_len
        # (AdaptiveAvgPool1d(1)), then the folded LN affine (exact: per-channel
        # affine commutes with the mean over tokens).
        pooled = (acc_ref[...] - corr_ref[...]) * (1.0 / seq_len)   # [TB, P]
        pooled = pooled * g_ref[...] + bt_ref[...]
        # fc1 + ReLU
        h = jnp.dot(pooled, w1_ref[...],
                    preferred_element_type=jnp.float32) + b1_ref[...]
        h = jnp.maximum(h, 0.0)
        # fc2
        logits = jnp.dot(h, w2_ref[...],
                         preferred_element_type=jnp.float32) + b2_ref[...]
        logit_ref[...] = logits
        # Softmax over the first num_classes lanes only; padded lanes -> prob 0.
        col = jax.lax.broadcasted_iota(jnp.int32, logits.shape, 1)
        masked = jnp.where(col < num_classes, logits, -jnp.inf)
        m = jnp.max(masked, axis=-1, keepdims=True)
        e = jnp.exp(masked - m)
        prob_ref[...] = e * pl.reciprocal(jnp.sum(e, axis=-1, keepdims=True))


# ----------------------------------------------------------------------------
# Wrapper
# ----------------------------------------------------------------------------
def _round_up(n, m):
    return ((n + m - 1) // m) * m


@functools.lru_cache(maxsize=1)
def _vmem_capacity_bytes():
    """Per-core VMEM capacity; conservative (v7x = 64 MiB) fallback."""
    try:
        return int(pltpu.get_tpu_info().vmem_capacity_bytes)
    except Exception:
        return 64 * 1024 * 1024


@jax.jit
def early_exit_block(x, gamma, beta, w1, b1, w2, b2):
    """EarlyExitBlock forward.

    x:  [B, S, P]  (f32 or bf16; LN math is done in f32 in-kernel)
    gamma, beta: [P]
    w1: [P, H], b1: [H]   (in, out) layout — transpose of torch Linear.weight
    w2: [H, C], b2: [C]
    returns (logits [B, C] f32, probs [B, C] f32)
    """
    B, S, P = x.shape
    H = w1.shape[1]
    C = w2.shape[1]

    # Pad hidden/class dims to lane-friendly multiples of 128 (exact: zero
    # pad -> relu(0)=0 feeds zero w2 rows; padded logit lanes masked in softmax).
    Hp = _round_up(H, 128)
    Cp = _round_up(C, 128)
    w1p = jnp.pad(w1.astype(jnp.float32), ((0, 0), (0, Hp - H)))
    b1p = jnp.pad(b1.astype(jnp.float32), (0, Hp - H)).reshape(1, Hp)
    w2p = jnp.pad(w2.astype(jnp.float32), ((0, Hp - H), (0, Cp - C)))
    b2p = jnp.pad(b2.astype(jnp.float32), (0, Cp - C)).reshape(1, Cp)
    g2 = gamma.astype(jnp.float32).reshape(1, P)
    bt2 = beta.astype(jnp.float32).reshape(1, P)

    # Generation-aware VMEM sizing.
    vmem_cap = _vmem_capacity_bytes()
    x_budget = int(vmem_cap * 0.33)      # bytes for the double-buffered x block
    vmem_limit = int(vmem_cap * 0.60)    # headroom for Mosaic internal scratch

    itemsize = jnp.dtype(x.dtype).itemsize

    # Batch tile: fill MXU sublanes, amortize weight DMA, and keep >= 2
    # "parallel" grid steps when B >= 16 so both v7x TensorCores get work.
    if B >= 16:
        TB = min(128, max(8, ((B // 2) // 8) * 8))
    else:
        TB = 8
    Bp = _round_up(B, TB)

    # Seq tile: largest multiple of the native sublane tile that keeps the
    # double-buffered x block under the budget; pad S (zeros are exact).
    align = 16 if itemsize < 4 else 8
    ts_budget = max(align, x_budget // (2 * TB * P * itemsize))
    n_s = -(-S // ts_budget)                       # number of seq steps
    TS = _round_up(-(-S // n_s), align)
    Sp = TS * n_s

    if Bp != B or Sp != S:
        x = jnp.pad(x, ((0, Bp - B), (0, Sp - S), (0, 0)))

    grid = (Bp // TB, Sp // TS)
    kernel = functools.partial(_ee_block_kernel, num_classes=C, seq_len=S)

    cost = pl.CostEstimate(
        flops=int(4 * Bp * Sp * P + 2 * Bp * (P * Hp + Hp * Cp)),
        transcendentals=int(Bp * Sp + Bp * Cp),
        bytes_accessed=int(Bp * Sp * P * itemsize
                           + 4 * (P * Hp + Hp * Cp + Hp + Cp + 2 * P)
                           + 4 * 2 * Bp * Cp))

    logits_p, probs_p = pl.pallas_call(
        kernel,
        out_shape=(jax.ShapeDtypeStruct((Bp, Cp), jnp.float32),
                   jax.ShapeDtypeStruct((Bp, Cp), jnp.float32)),
        grid=grid,
        in_specs=[
            pl.BlockSpec((TB, TS, P), lambda b, s: (b, s, 0)),
            pl.BlockSpec((1, P), lambda b, s: (0, 0)),
            pl.BlockSpec((1, P), lambda b, s: (0, 0)),
            pl.BlockSpec((P, Hp), lambda b, s: (0, 0)),
            pl.BlockSpec((1, Hp), lambda b, s: (0, 0)),
            pl.BlockSpec((Hp, Cp), lambda b, s: (0, 0)),
            pl.BlockSpec((1, Cp), lambda b, s: (0, 0)),
        ],
        out_specs=(pl.BlockSpec((TB, Cp), lambda b, s: (b, 0)),
                   pl.BlockSpec((TB, Cp), lambda b, s: (b, 0))),
        scratch_shapes=[pltpu.VMEM((TB, P), jnp.float32),
                        pltpu.VMEM((TB, 1), jnp.float32)],
        compiler_params=pltpu.CompilerParams(
            dimension_semantics=("parallel", "arbitrary"),
            vmem_limit_bytes=vmem_limit),
        cost_estimate=cost,
    )(x, g2, bt2, w1p, b1p, w2p, b2p)

    return logits_p[:B, :C], probs_p[:B, :C]


# ----------------------------------------------------------------------------
# Pure-JAX reference (mirrors the torch module exactly)
# ----------------------------------------------------------------------------
def _reference(x, gamma, beta, w1, b1, w2, b2):
    x = x.astype(jnp.float32)
    mean = jnp.mean(x, axis=-1, keepdims=True)
    var = jnp.mean((x - mean) ** 2, axis=-1, keepdims=True)
    xn = (x - mean) / jnp.sqrt(var + _LN_EPS) * gamma + beta
    pooled = jnp.mean(xn, axis=1)                  # AdaptiveAvgPool1d(1) on seq
    h = jnp.maximum(pooled @ w1 + b1, 0.0)
    logits = h @ w2 + b2
    probs = jax.nn.softmax(logits, axis=-1)
    return logits, probs


# ----------------------------------------------------------------------------
if __name__ == "__main__":
    B, S, P = 2, 64, 128          # batch, seq tokens, planes
    num_classes = 10
    hidden = num_classes * 10      # 100, padded to 128 inside the kernel

    key = jax.random.PRNGKey(0)
    ks = jax.random.split(key, 6)
    x = jax.random.normal(ks[0], (B, S, P), jnp.float32)
    gamma = 1.0 + 0.1 * jax.random.normal(ks[1], (P,), jnp.float32)
    beta = 0.1 * jax.random.normal(ks[2], (P,), jnp.float32)
    w1 = 0.05 * jax.random.normal(ks[3], (P, hidden), jnp.float32)
    b1 = 0.05 * jax.random.normal(ks[4], (hidden,), jnp.float32)
    kw2, kb2 = jax.random.split(ks[5])
    w2 = 0.05 * jax.random.normal(kw2, (hidden, num_classes), jnp.float32)
    b2 = 0.05 * jax.random.normal(kb2, (num_classes,), jnp.float32)

    logits, probs = early_exit_block(x, gamma, beta, w1, b1, w2, b2)
    logits, probs = jax.block_until_ready((logits, probs))

    ref_logits, ref_probs = _reference(x, gamma, beta, w1, b1, w2, b2)
    assert logits.shape == (B, num_classes) and probs.shape == (B, num_classes)
    assert bool(jnp.all(jnp.isfinite(logits))) and bool(jnp.all(jnp.isfinite(probs)))
    assert float(jnp.max(jnp.abs(logits - ref_logits))) < 5e-4
    assert float(jnp.max(jnp.abs(probs - ref_probs))) < 1e-4
    assert float(jnp.max(jnp.abs(jnp.sum(probs, axis=-1) - 1.0))) < 1e-5
    print("KERNEL_OK")
</pallas_src>

<mosaic_0001>
module attributes {stable_mosaic.version = 11 : i64} {
  func.func @_ee_block_kernel(%arg0: i32, %arg1: i32, %arg2: memref<8x64x128xf32, #tpu.memory_space<vmem>>, %arg3: memref<1x128xf32, #tpu.memory_space<vmem>>, %arg4: memref<1x128xf32, #tpu.memory_space<vmem>>, %arg5: memref<128x128xf32, #tpu.memory_space<vmem>>, %arg6: memref<1x128xf32, #tpu.memory_space<vmem>>, %arg7: memref<128x128xf32, #tpu.memory_space<vmem>>, %arg8: memref<1x128xf32, #tpu.memory_space<vmem>>, %arg9: memref<8x128xf32, #tpu.memory_space<vmem>>, %arg10: memref<8x128xf32, #tpu.memory_space<vmem>>, %arg11: memref<8x128xf32, #tpu.memory_space<vmem>>, %arg12: memref<8x1xf32, #tpu.memory_space<vmem>>) attributes {dimension_semantics = [#tpu.dimension_semantics<parallel>, #tpu.dimension_semantics<arbitrary>], iteration_bounds = array<i64: 1, 1>, scalar_prefetch = 0 : i64, scratch_operands = 2 : i64, tpu.core_type = #tpu.core_type<tc>, window_params = [{transform_indices = @transform_0, window_bounds = array<i64: 8, 64, 128>}, {pipeline_mode = #tpu.pipeline_mode<synchronous>, transform_indices = @transform_1, window_bounds = array<i64: 1, 128>}, {pipeline_mode = #tpu.pipeline_mode<synchronous>, transform_indices = @transform_2, window_bounds = array<i64: 1, 128>}, {pipeline_mode = #tpu.pipeline_mode<synchronous>, transform_indices = @transform_3, window_bounds = array<i64: 128, 128>}, {pipeline_mode = #tpu.pipeline_mode<synchronous>, transform_indices = @transform_4, window_bounds = array<i64: 1, 128>}, {pipeline_mode = #tpu.pipeline_mode<synchronous>, transform_indices = @transform_5, window_bounds = array<i64: 128, 128>}, {pipeline_mode = #tpu.pipeline_mode<synchronous>, transform_indices = @transform_6, window_bounds = array<i64: 1, 128>}, {transform_indices = @transform_7, window_bounds = array<i64: 8, 128>}, {transform_indices = @transform_8, window_bounds = array<i64: 8, 128>}]} {
    %c0_i32 = arith.constant 0 : i32
    %0 = arith.cmpi eq, %arg1, %c0_i32 : i32
    %1 = arith.extui %0 : i1 to i32
    %c0_i32_0 = arith.constant 0 : i32
    %2 = arith.cmpi ne, %1, %c0_i32_0 : i32
    scf.if %2 {
      %cst_20 = arith.constant 0.000000e+00 : f32
      %34 = vector.broadcast %cst_20 : f32 to vector<8x128xf32>
      %c0_21 = arith.constant 0 : index
      %c0_22 = arith.constant 0 : index
      %35 = vector.load %arg11[%c0_21, %c0_22] : memref<8x128xf32, #tpu.memory_space<vmem>>, vector<8x128xf32>
      tpu.vector_store %arg11[%c0_21, %c0_22], %34 {strides = array<i32>} : memref<8x128xf32, #tpu.memory_space<vmem>>, vector<8x128xf32>,
      %cst_23 = arith.constant 0.000000e+00 : f32
      %36 = vector.broadcast %cst_23 : f32 to vector<8x1xf32>
      %c0_24 = arith.constant 0 : index
      %c0_25 = arith.constant 0 : index
      %37 = vector.load %arg12[%c0_24, %c0_25] : memref<8x1xf32, #tpu.memory_space<vmem>>, vector<8x1xf32>
      tpu.vector_store %arg12[%c0_24, %c0_25], %36 {strides = array<i32>} : memref<8x1xf32, #tpu.memory_space<vmem>>, vector<8x1xf32>,
    } else {
    }
    %c0 = arith.constant 0 : index
    %c0_1 = arith.constant 0 : index
    %c0_2 = arith.constant 0 : index
    %3 = vector.load %arg2[%c0, %c0_1, %c0_2] : memref<8x64x128xf32, #tpu.memory_space<vmem>>, vector<8x64x128xf32>
    %cst = arith.constant dense<0.000000e+00> : vector<8x64xf32>
    %4 = vector.multi_reduction <add>, %3, %cst [2] : vector<8x64x128xf32> to vector<8x64xf32>
    %5 = vector.shape_cast %4 : vector<8x64xf32> to vector<8x64x1xf32>
    %6 = arith.mulf %3, %3 : vector<8x64x128xf32>
    %cst_3 = arith.constant dense<0.000000e+00> : vector<8x64xf32>
    %7 = vector.multi_reduction <add>, %6, %cst_3 [2] : vector<8x64x128xf32> to vector<8x64xf32>
    %8 = vector.shape_cast %7 : vector<8x64xf32> to vector<8x64x1xf32>
    %cst_4 = arith.constant 7.812500e-03 : f32
    %9 = vector.broadcast %cst_4 : f32 to vector<8x64x1xf32>
    %10 = arith.mulf %5, %9 : vector<8x64x1xf32>
    %cst_5 = arith.constant 7.812500e-03 : f32
    %11 = vector.broadcast %cst_5 : f32 to vector<8x64x1xf32>
    %12 = arith.mulf %8, %11 : vector<8x64x1xf32>
    %13 = arith.mulf %10, %10 : vector<8x64x1xf32>
    %14 = arith.subf %12, %13 : vector<8x64x1xf32>
    %cst_6 = arith.constant 0.000000e+00 : f32
    %15 = vector.broadcast %cst_6 : f32 to vector<8x64x1xf32>
    %16 = arith.maximumf %14, %15 : vector<8x64x1xf32>
    %cst_7 = arith.constant 9.99999974E-6 : f32
    %17 = vector.broadcast %cst_7 : f32 to vector<8x64x1xf32>
    %18 = arith.addf %16, %17 : vector<8x64x1xf32>
    %19 = math.rsqrt %18 : vector<8x64x1xf32>
    %c0_8 = arith.constant 0 : index
    %c0_9 = arith.constant 0 : index
    %20 = vector.load %arg11[%c0_8, %c0_9] : memref<8x128xf32, #tpu.memory_space<vmem>>, vector<8x128xf32>
    %21 = vector.broadcast %19 : vector<8x64x1xf32> to vector<8x64x128xf32>
    %22 = arith.mulf %3, %21 : vector<8x64x128xf32>
    %cst_10 = arith.constant dense<0.000000e+00> : vector<8x128xf32>
    %23 = vector.multi_reduction <add>, %22, %cst_10 [1] : vector<8x64x128xf32> to vector<8x128xf32>
    %24 = arith.addf %20, %23 : vector<8x128xf32>
    %c0_11 = arith.constant 0 : index
    %c0_12 = arith.constant 0 : index
    %25 = vector.load %arg11[%c0_11, %c0_12] : memref<8x128xf32, #tpu.memory_space<vmem>>, vector<8x128xf32>
    tpu.vector_store %arg11[%c0_11, %c0_12], %24 {strides = array<i32>} : memref<8x128xf32, #tpu.memory_space<vmem>>, vector<8x128xf32>,
    %c0_13 = arith.constant 0 : index
    %c0_14 = arith.constant 0 : index
    %26 = vector.load %arg12[%c0_13, %c0_14] : memref<8x1xf32, #tpu.memory_space<vmem>>, vector<8x1xf32>
    %27 = arith.mulf %10, %19 : vector<8x64x1xf32>
    %cst_15 = arith.constant dense<0.000000e+00> : vector<8x1xf32>
    %28 = vector.multi_reduction <add>, %27, %cst_15 [1] : vector<8x64x1xf32> to vector<8x1xf32>
    %29 = arith.addf %26, %28 : vector<8x1xf32>
    %c0_16 = arith.constant 0 : index
    %c0_17 = arith.constant 0 : index
    %30 = vector.load %arg12[%c0_16, %c0_17] : memref<8x1xf32, #tpu.memory_space<vmem>>, vector<8x1xf32>
    tpu.vector_store %arg12[%c0_16, %c0_17], %29 {strides = array<i32>} : memref<8x1xf32, #tpu.memory_space<vmem>>, vector<8x1xf32>,
    %c0_i32_18 = arith.constant 0 : i32
    %31 = arith.cmpi eq, %arg1, %c0_i32_18 : i32
    %32 = arith.extui %31 : i1 to i32
    %c0_i32_19 = arith.constant 0 : i32
    %33 = arith.cmpi ne, %32, %c0_i32_19 : i32
    scf.if %33 {
      %c0_20 = arith.constant 0 : index
      %c0_21 = arith.constant 0 : index
      %34 = vector.load %arg11[%c0_20, %c0_21] : memref<8x128xf32, #tpu.memory_space<vmem>>, vector<8x128xf32>
      %c0_22 = arith.constant 0 : index
      %c0_23 = arith.constant 0 : index
      %35 = vector.load %arg12[%c0_22, %c0_23] : memref<8x1xf32, #tpu.memory_space<vmem>>, vector<8x1xf32>
      %36 = vector.broadcast %35 : vector<8x1xf32> to vector<8x128xf32>
      %37 = arith.subf %34, %36 : vector<8x128xf32>
      %cst_24 = arith.constant 1.562500e-02 : f32
      %38 = vector.broadcast %cst_24 : f32 to vector<8x128xf32>
      %39 = arith.mulf %37, %38 : vector<8x128xf32>
      %c0_25 = arith.constant 0 : index
      %c0_26 = arith.constant 0 : index
      %40 = vector.load %arg3[%c0_25, %c0_26] : memref<1x128xf32, #tpu.memory_space<vmem>>, vector<1x128xf32>
      %41 = vector.broadcast %40 : vector<1x128xf32> to vector<8x128xf32>
      %42 = arith.mulf %39, %41 : vector<8x128xf32>
      %c0_27 = arith.constant 0 : index
      %c0_28 = arith.constant 0 : index
      %43 = vector.load %arg4[%c0_27, %c0_28] : memref<1x128xf32, #tpu.memory_space<vmem>>, vector<1x128xf32>
      %44 = vector.broadcast %43 : vector<1x128xf32> to vector<8x128xf32>
      %45 = arith.addf %42, %44 : vector<8x128xf32>
      %c0_29 = arith.constant 0 : index
      %c0_30 = arith.constant 0 : index
      %46 = vector.load %arg5[%c0_29, %c0_30] : memref<128x128xf32, #tpu.memory_space<vmem>>, vector<128x128xf32>
      %cst_31 = arith.constant dense<0.000000e+00> : vector<8x128xf32>
      %47 = tpu.matmul %45, %46, %cst_31 {dimension_numbers = #tpu.dot_dimension_numbers<[1], [0], [0], [1], [0, 0, 1, 1], [], []>} : vector<8x128xf32>, vector<128x128xf32>, vector<8x128xf32> -> vector<8x128xf32>
      %c0_32 = arith.constant 0 : index
      %c0_33 = arith.constant 0 : index
      %48 = vector.load %arg6[%c0_32, %c0_33] : memref<1x128xf32, #tpu.memory_space<vmem>>, vector<1x128xf32>
      %49 = vector.broadcast %48 : vector<1x128xf32> to vector<8x128xf32>
      %50 = arith.addf %47, %49 : vector<8x128xf32>
      %cst_34 = arith.constant 0.000000e+00 : f32
      %51 = vector.broadcast %cst_34 : f32 to vector<8x128xf32>
      %52 = arith.maximumf %50, %51 : vector<8x128xf32>
      %c0_35 = arith.constant 0 : index
      %c0_36 = arith.constant 0 : index
      %53 = vector.load %arg7[%c0_35, %c0_36] : memref<128x128xf32, #tpu.memory_space<vmem>>, vector<128x128xf32>
      %cst_37 = arith.constant dense<0.000000e+00> : vector<8x128xf32>
      %54 = tpu.matmul %52, %53, %cst_37 {dimension_numbers = #tpu.dot_dimension_numbers<[1], [0], [0], [1], [0, 0, 1, 1], [], []>} : vector<8x128xf32>, vector<128x128xf32>, vector<8x128xf32> -> vector<8x128xf32>
      %c0_38 = arith.constant 0 : index
      %c0_39 = arith.constant 0 : index
      %55 = vector.load %arg8[%c0_38, %c0_39] : memref<1x128xf32, #tpu.memory_space<vmem>>, vector<1x128xf32>
      %56 = vector.broadcast %55 : vector<1x128xf32> to vector<8x128xf32>
      %57 = arith.addf %54, %56 : vector<8x128xf32>
      %c0_40 = arith.constant 0 : index
      %c0_41 = arith.constant 0 : index
      %58 = vector.load %arg9[%c0_40, %c0_41] : memref<8x128xf32, #tpu.memory_space<vmem>>, vector<8x128xf32>
      tpu.vector_store %arg9[%c0_40, %c0_41], %57 {strides = array<i32>} : memref<8x128xf32, #tpu.memory_space<vmem>>, vector<8x128xf32>,
      %59 = tpu.iota {dimensions = array<i32: 1>} : vector<8x128xi32>
      %c10_i32 = arith.constant 10 : i32
      %60 = vector.broadcast %c10_i32 : i32 to vector<8x128xi32>
      %61 = arith.cmpi slt, %59, %60 : vector<8x128xi32>
      %cst_42 = arith.constant 0xFF800000 : f32
      %62 = vector.broadcast %cst_42 : f32 to vector<8x128xf32>
      %63 = arith.select %61, %57, %62 : vector<8x128xi1>, vector<8x128xf32>
      %cst_43 = arith.constant dense<0xFF800000> : vector<8xf32>
      %64 = vector.multi_reduction <maximumf>, %63, %cst_43 [1] : vector<8x128xf32> to vector<8xf32>
      %65 = vector.shape_cast %64 : vector<8xf32> to vector<8x1xf32>
      %66 = vector.broadcast %65 : vector<8x1xf32> to vector<8x128xf32>
      %67 = arith.subf %63, %66 : vector<8x128xf32>
      %68 = math.exp %67 : vector<8x128xf32>
      %cst_44 = arith.constant dense<0.000000e+00> : vector<8xf32>
      %69 = vector.multi_reduction <add>, %68, %cst_44 [1] : vector<8x128xf32> to vector<8xf32>
      %70 = vector.shape_cast %69 : vector<8xf32> to vector<8x1xf32>
      %71 = tpu.reciprocal %70 : vector<8x1xf32> -> vector<8x1xf32>
      %72 = vector.broadcast %71 : vector<8x1xf32> to vector<8x128xf32>
      %73 = arith.mulf %68, %72 : vector<8x128xf32>
      %c0_45 = arith.constant 0 : index
      %c0_46 = arith.constant 0 : index
      %74 = vector.load %arg10[%c0_45, %c0_46] : memref<8x128xf32, #tpu.memory_space<vmem>>, vector<8x128xf32>
      tpu.vector_store %arg10[%c0_45, %c0_46], %73 {strides = array<i32>} : memref<8x128xf32, #tpu.memory_space<vmem>>, vector<8x128xf32>,
    } else {
    }
    return
  }
  func.func @transform_0(%arg0: i32, %arg1: i32) -> (i32, i32, i32) {
    %c0_i32 = arith.constant 0 : i32
    %c0_i32_0 = arith.constant 0 : i32
    return %arg0, %arg1, %c0_i32 : i32, i32, i32
  }
  func.func @transform_1(%arg0: i32, %arg1: i32) -> (i32, i32) {
    %c0_i32 = arith.constant 0 : i32
    %c0_i32_0 = arith.constant 0 : i32
    %c0_i32_1 = arith.constant 0 : i32
    return %c0_i32, %c0_i32_0 : i32, i32
  }
  func.func @transform_2(%arg0: i32, %arg1: i32) -> (i32, i32) {
    %c0_i32 = arith.constant 0 : i32
    %c0_i32_0 = arith.constant 0 : i32
    %c0_i32_1 = arith.constant 0 : i32
    return %c0_i32, %c0_i32_0 : i32, i32
  }
  func.func @transform_3(%arg0: i32, %arg1: i32) -> (i32, i32) {
    %c0_i32 = arith.constant 0 : i32
    %c0_i32_0 = arith.constant 0 : i32
    %c0_i32_1 = arith.constant 0 : i32
    return %c0_i32, %c0_i32_0 : i32, i32
  }
  func.func @transform_4(%arg0: i32, %arg1: i32) -> (i32, i32) {
    %c0_i32 = arith.constant 0 : i32
    %c0_i32_0 = arith.constant 0 : i32
    %c0_i32_1 = arith.constant 0 : i32
    return %c0_i32, %c0_i32_0 : i32, i32
  }
  func.func @transform_5(%arg0: i32, %arg1: i32) -> (i32, i32) {
    %c0_i32 = arith.constant 0 : i32
    %c0_i32_0 = arith.constant 0 : i32
    %c0_i32_1 = arith.constant 0 : i32
    return %c0_i32, %c0_i32_0 : i32, i32
  }
  func.func @transform_6(%arg0: i32, %arg1: i32) -> (i32, i32) {
    %c0_i32 = arith.constant 0 : i32
    %c0_i32_0 = arith.constant 0 : i32
    %c0_i32_1 = arith.constant 0 : i32
    return %c0_i32, %c0_i32_0 : i32, i32
  }
  func.func @transform_7(%arg0: i32, %arg1: i32) -> (i32, i32) {
    %c0_i32 = arith.constant 0 : i32
    %c0_i32_0 = arith.constant 0 : i32
    return %arg0, %c0_i32 : i32, i32
  }
  func.func @transform_8(%arg0: i32, %arg1: i32) -> (i32, i32) {
    %c0_i32 = arith.constant 0 : i32
    %c0_i32_0 = arith.constant 0 : i32
    return %arg0, %c0_i32 : i32, i32
  }
}

</mosaic_0001>

<llo_original>
// kernel: early_exit_block.1
$region0: #{early_exit_block.1}
  #allocation0 [shape = 'u32[]', space=smem, size = 0x4, offset = 0x4, fixed_abs, tag = 'smem constant byte address 0x4 - core index']
  #allocation1 [shape = 'u32[144,128]{1,0:T(1,128)}', space=vmem, size = 0x12000, scoped, tag = 'internal scratch']
  #allocation2 [shape = 'f32[8,128]{1,0:T(8,128)}', space=vmem, size = 0x1000, scoped, tag = 'scratch operand']
  #allocation3 [shape = 'f32[8,1]{1,0:T(8,128)}', space=vmem, size = 0x1000, scoped, tag = 'scratch operand']
  %s0 = inlined_call_operand.vmem [shape: f32[8,64,128], index: 0, kind: input, shape index: {}]
  %s1 = inlined_call_operand.vmem [shape: f32[1,128], index: 1, kind: input, shape index: {}]
  %s2 = inlined_call_operand.vmem [shape: f32[1,128], index: 2, kind: input, shape index: {}]
  %s3 = inlined_call_operand.vmem [shape: f32[128,128], index: 3, kind: input, shape index: {}]
  %s4 = inlined_call_operand.vmem [shape: f32[1,128], index: 4, kind: input, shape index: {}]
  %s5 = inlined_call_operand.vmem [shape: f32[128,128], index: 5, kind: input, shape index: {}]
  %s6 = inlined_call_operand.vmem [shape: f32[1,128], index: 6, kind: input, shape index: {}]
  %s7 = inlined_call_operand.vmem [shape: f32[8,128], index: 7, kind: output, shape index: {0}]
  %s8 = inlined_call_operand.vmem [shape: f32[8,128], index: 8, kind: output, shape index: {1}]
  %9 = xla_tuple %s7, %s8
  %s10 = sld [smem:[#allocation0]]
  $region54: #{early_exit_block.1} parent=0
    _
  %s12 = ssub.s32 1, %s10
  %s13 = scalar_select 0, %s12, %s10
  // Predicated region
  $region2: #{early_exit_block.1} parent=0 // pred_check
    _
  $region3: #{early_exit_block.1} parent=0 // pred_check_branch
    %15 = sbr.rel (0) target = $region5
  $region4: #{early_exit_block.1} parent=0 // pred_region
    _
  $region5: #{early_exit_block.1} parent=0 // pred_fallthru
    _
  // Predicated region
  $region6: #{early_exit_block.1} parent=0 // pred_check
    _
  $region7: #{early_exit_block.1} parent=0 // pred_check_branch
    %17 = sbr.rel (0) target = $region9
  $region8: #{early_exit_block.1} parent=0 // pred_region
    _
  $region9: #{early_exit_block.1} parent=0 // pred_fallthru
    _
  // Predicated region
  $region10: #{early_exit_block.1} parent=0 // pred_check
    _
  $region11: #{early_exit_block.1} parent=0 // pred_check_branch
    %19 = sbr.rel (0) target = $region13
  $region12: #{early_exit_block.1} parent=0 // pred_region
    _
  $region13: #{early_exit_block.1} parent=0 // pred_fallthru
    _
  // Predicated region
  $region14: #{early_exit_block.1} parent=0 // pred_check
    _
  $region15: #{early_exit_block.1} parent=0 // pred_check_branch
    %21 = sbr.rel (0) target = $region17
  $region16: #{early_exit_block.1} parent=0 // pred_region
    _
  $region17: #{early_exit_block.1} parent=0 // pred_fallthru
    _
  // Predicated region
  $region18: #{early_exit_block.1} parent=0 // pred_check
    _
  $region19: #{early_exit_block.1} parent=0 // pred_check_branch
    %23 = sbr.rel (0) target = $region21
  $region20: #{early_exit_block.1} parent=0 // pred_region
    _
  $region21: #{early_exit_block.1} parent=0 // pred_fallthru
    _
  // Predicated region
  $region22: #{early_exit_block.1} parent=0 // pred_check
    _
  $region23: #{early_exit_block.1} parent=0 // pred_check_branch
    %25 = sbr.rel (0) target = $region25
  $region24: #{early_exit_block.1} parent=0 // pred_region
    _
  $region25: #{early_exit_block.1} parent=0 // pred_fallthru
    _
  // Predicated region
  $region26: #{early_exit_block.1} parent=0 // pred_check
    _
  $region27: #{early_exit_block.1} parent=0 // pred_check_branch
    %27 = sbr.rel (0) target = $region29
  $region28: #{early_exit_block.1} parent=0 // pred_region
    _
  $region29: #{early_exit_block.1} parent=0 // pred_fallthru
    _
  %p28 = scmp.eq.s32.totalorder 0, 0
  // Predicated region
  $region30: #{early_exit_block.1} parent=0 // pred_check
    %p29 = pneg %p28
  $region31: #{early_exit_block.1} parent=0 // pred_check_branch
    %31 = sbr.rel (%p29) target = $region33
  $region32: #{early_exit_block.1} parent=0 // pred_region
    %32 = vst [vmem:[#allocation2] sm:$0xff] 0.0
    %vm33 = vcmask 7168
    %34 = vst.msk [vmem:[#allocation3] sm:$0xff] %vm33, 0.0
  $region33: #{early_exit_block.1} parent=0 // pred_fallthru
    _
  %v35 = vld [vmem:[%s0] sm:$0xff]
  %v36 = vld [vmem:[%s0 + $0x8] sm:$0xff]
  %v37 = vld [vmem:[%s0 + $0x10] sm:$0xff]
  %v38 = vld [vmem:[%s0 + $0x18] sm:$0xff]
  %v39 = vld [vmem:[%s0 + $0x20] sm:$0xff]
  %v40 = vld [vmem:[%s0 + $0x28] sm:$0xff]
  %v41 = vld [vmem:[%s0 + $0x30] sm:$0xff]
  %v42 = vld [vmem:[%s0 + $0x38] sm:$0xff]
  %v43 = vld [vmem:[%s0 + $0x40] sm:$0xff]
  %v44 = vld [vmem:[%s0 + $0x48] sm:$0xff]
  %v45 = vld [vmem:[%s0 + $0x50] sm:$0xff]
  %v46 = vld [vmem:[%s0 + $0x58] sm:$0xff]
  %v47 = vld [vmem:[%s0 + $0x60] sm:$0xff]
  %v48 = vld [vmem:[%s0 + $0x68] sm:$0xff]
  %v49 = vld [vmem:[%s0 + $0x70] sm:$0xff]
  %v50 = vld [vmem:[%s0 + $0x78] sm:$0xff]
  %v51 = vld [vmem:[%s0 + $0x80] sm:$0xff]
  %v52 = vld [vmem:[%s0 + $0x88] sm:$0xff]
  %v53 = vld [vmem:[%s0 + $0x90] sm:$0xff]
  %v54 = vld [vmem:[%s0 + $0x98] sm:$0xff]
  %v55 = vld [vmem:[%s0 + $0xa0] sm:$0xff]
  %v56 = vld [vmem:[%s0 + $0xa8] sm:$0xff]
  %v57 = vld [vmem:[%s0 + $0xb0] sm:$0xff]
  %v58 = vld [vmem:[%s0 + $0xb8] sm:$0xff]
  %v59 = vld [vmem:[%s0 + $0xc0] sm:$0xff]
  %v60 = vld [vmem:[%s0 + $0xc8] sm:$0xff]
  %v61 = vld [vmem:[%s0 + $0xd0] sm:$0xff]
  %v62 = vld [vmem:[%s0 + $0xd8] sm:$0xff]
  %v63 = vld [vmem:[%s0 + $0xe0] sm:$0xff]
  %v64 = vld [vmem:[%s0 + $0xe8] sm:$0xff]
  %v65 = vld [vmem:[%s0 + $0xf0] sm:$0xff]
  %v66 = vld [vmem:[%s0 + $0xf8] sm:$0xff]
  %v67 = vld [vmem:[%s0 + $0x100] sm:$0xff]
  %v68 = vld [vmem:[%s0 + $0x108] sm:$0xff]
  %v69 = vld [vmem:[%s0 + $0x110] sm:$0xff]
  %v70 = vld [vmem:[%s0 + $0x118] sm:$0xff]
  %v71 = vld [vmem:[%s0 + $0x120] sm:$0xff]
  %v72 = vld [vmem:[%s0 + $0x128] sm:$0xff]
  %v73 = vld [vmem:[%s0 + $0x130] sm:$0xff]
  %v74 = vld [vmem:[%s0 + $0x138] sm:$0xff]
  %v75 = vld [vmem:[%s0 + $0x140] sm:$0xff]
  %v76 = vld [vmem:[%s0 + $0x148] sm:$0xff]
  %v77 = vld [vmem:[%s0 + $0x150] sm:$0xff]
  %v78 = vld [vmem:[%s0 + $0x158] sm:$0xff]
  %v79 = vld [vmem:[%s0 + $0x160] sm:$0xff]
  %v80 = vld [vmem:[%s0 + $0x168] sm:$0xff]
  %v81 = vld [vmem:[%s0 + $0x170] sm:$0xff]
  %v82 = vld [vmem:[%s0 + $0x178] sm:$0xff]
  %v83 = vld [vmem:[%s0 + $0x180] sm:$0xff]
  %v84 = vld [vmem:[%s0 + $0x188] sm:$0xff]
  %v85 = vld [vmem:[%s0 + $0x190] sm:$0xff]
  %v86 = vld [vmem:[%s0 + $0x198] sm:$0xff]
  %v87 = vld [vmem:[%s0 + $0x1a0] sm:$0xff]
  %v88 = vld [vmem:[%s0 + $0x1a8] sm:$0xff]
  %v89 = vld [vmem:[%s0 + $0x1b0] sm:$0xff]
  %v90 = vld [vmem:[%s0 + $0x1b8] sm:$0xff]
  %v91 = vld [vmem:[%s0 + $0x1c0] sm:$0xff]
  %v92 = vld [vmem:[%s0 + $0x1c8] sm:$0xff]
  %v93 = vld [vmem:[%s0 + $0x1d0] sm:$0xff]
  %v94 = vld [vmem:[%s0 + $0x1d8] sm:$0xff]
  %v95 = vld [vmem:[%s0 + $0x1e0] sm:$0xff]
  %v96 = vld [vmem:[%s0 + $0x1e8] sm:$0xff]
  %v97 = vld [vmem:[%s0 + $0x1f0] sm:$0xff]
  %v98 = vld [vmem:[%s0 + $0x1f8] sm:$0xff]
  %99 = vadd.xlane.f32.xlu0 %v35
  %v100 = vpop.xlane.xlu0 %99
  %101 = vadd.xlane.f32.xlu0 %v36
  %v102 = vpop.xlane.xlu0 %101
  %103 = vadd.xlane.f32.xlu0 %v37
  %v104 = vpop.xlane.xlu0 %103
  %105 = vadd.xlane.f32.xlu0 %v38
  %v106 = vpop.xlane.xlu0 %105
  %107 = vadd.xlane.f32.xlu0 %v39
  %v108 = vpop.xlane.xlu0 %107
  %109 = vadd.xlane.f32.xlu0 %v40
  %v110 = vpop.xlane.xlu0 %109
  %111 = vadd.xlane.f32.xlu0 %v41
  %v112 = vpop.xlane.xlu0 %111
  %113 = vadd.xlane.f32.xlu0 %v42
  %v114 = vpop.xlane.xlu0 %113
  %115 = vadd.xlane.f32.xlu0 %v43
  %v116 = vpop.xlane.xlu0 %115
  %117 = vadd.xlane.f32.xlu0 %v44
  %v118 = vpop.xlane.xlu0 %117
  %119 = vadd.xlane.f32.xlu0 %v45
  %v120 = vpop.xlane.xlu0 %119
  %121 = vadd.xlane.f32.xlu0 %v46
  %v122 = vpop.xlane.xlu0 %121
  %123 = vadd.xlane.f32.xlu0 %v47
  %v124 = vpop.xlane.xlu0 %123
  %125 = vadd.xlane.f32.xlu0 %v48
  %v126 = vpop.xlane.xlu0 %125
  %127 = vadd.xlane.f32.xlu0 %v49
  %v128 = vpop.xlane.xlu0 %127
  %129 = vadd.xlane.f32.xlu0 %v50
  %v130 = vpop.xlane.xlu0 %129
  %131 = vadd.xlane.f32.xlu0 %v51
  %v132 = vpop.xlane.xlu0 %131
  %133 = vadd.xlane.f32.xlu0 %v52
  %v134 = vpop.xlane.xlu0 %133
  %135 = vadd.xlane.f32.xlu0 %v53
  %v136 = vpop.xlane.xlu0 %135
  %137 = vadd.xlane.f32.xlu0 %v54
  %v138 = vpop.xlane.xlu0 %137
  %139 = vadd.xlane.f32.xlu0 %v55
  %v140 = vpop.xlane.xlu0 %139
  %141 = vadd.xlane.f32.xlu0 %v56
  %v142 = vpop.xlane.xlu0 %141
  %143 = vadd.xlane.f32.xlu0 %v57
  %v144 = vpop.xlane.xlu0 %143
  %145 = vadd.xlane.f32.xlu0 %v58
  %v146 = vpop.xlane.xlu0 %145
  %147 = vadd.xlane.f32.xlu0 %v59
  %v148 = vpop.xlane.xlu0 %147
  %149 = vadd.xlane.f32.xlu0 %v60
  %v150 = vpop.xlane.xlu0 %149
  %151 = vadd.xlane.f32.xlu0 %v61
  %v152 = vpop.xlane.xlu0 %151
  %153 = vadd.xlane.f32.xlu0 %v62
  %v154 = vpop.xlane.xlu0 %153
  %155 = vadd.xlane.f32.xlu0 %v63
  %v156 = vpop.xlane.xlu0 %155
  %157 = vadd.xlane.f32.xlu0 %v64
  %v158 = vpop.xlane.xlu0 %157
  %159 = vadd.xlane.f32.xlu0 %v65
  %v160 = vpop.xlane.xlu0 %159
  %161 = vadd.xlane.f32.xlu0 %v66
  %v162 = vpop.xlane.xlu0 %161
  %163 = vadd.xlane.f32.xlu0 %v67
  %v164 = vpop.xlane.xlu0 %163
  %165 = vadd.xlane.f32.xlu0 %v68
  %v166 = vpop.xlane.xlu0 %165
  %167 = vadd.xlane.f32.xlu0 %v69
  %v168 = vpop.xlane.xlu0 %167
  %169 = vadd.xlane.f32.xlu0 %v70
  %v170 = vpop.xlane.xlu0 %169
  %171 = vadd.xlane.f32.xlu0 %v71
  %v172 = vpop.xlane.xlu0 %171
  %173 = vadd.xlane.f32.xlu0 %v72
  %v174 = vpop.xlane.xlu0 %173
  %175 = vadd.xlane.f32.xlu0 %v73
  %v176 = vpop.xlane.xlu0 %175
  %177 = vadd.xlane.f32.xlu0 %v74
  %v178 = vpop.xlane.xlu0 %177
  %179 = vadd.xlane.f32.xlu0 %v75
  %v180 = vpop.xlane.xlu0 %179
  %181 = vadd.xlane.f32.xlu0 %v76
  %v182 = vpop.xlane.xlu0 %181
  %183 = vadd.xlane.f32.xlu0 %v77
  %v184 = vpop.xlane.xlu0 %183
  %185 = vadd.xlane.f32.xlu0 %v78
  %v186 = vpop.xlane.xlu0 %185
  %187 = vadd.xlane.f32.xlu0 %v79
  %v188 = vpop.xlane.xlu0 %187
  %189 = vadd.xlane.f32.xlu0 %v80
  %v190 = vpop.xlane.xlu0 %189
  %191 = vadd.xlane.f32.xlu0 %v81
  %v192 = vpop.xlane.xlu0 %191
  %193 = vadd.xlane.f32.xlu0 %v82
  %v194 = vpop.xlane.xlu0 %193
  %195 = vadd.xlane.f32.xlu0 %v83
  %v196 = vpop.xlane.xlu0 %195
  %197 = vadd.xlane.f32.xlu0 %v84
  %v198 = vpop.xlane.xlu0 %197
  %199 = vadd.xlane.f32.xlu0 %v85
  %v200 = vpop.xlane.xlu0 %199
  %201 = vadd.xlane.f32.xlu0 %v86
  %v202 = vpop.xlane.xlu0 %201
  %203 = vadd.xlane.f32.xlu0 %v87
  %v204 = vpop.xlane.xlu0 %203
  %205 = vadd.xlane.f32.xlu0 %v88
  %v206 = vpop.xlane.xlu0 %205
  %207 = vadd.xlane.f32.xlu0 %v89
  %v208 = vpop.xlane.xlu0 %207
  %209 = vadd.xlane.f32.xlu0 %v90
  %v210 = vpop.xlane.xlu0 %209
  %211 = vadd.xlane.f32.xlu0 %v91
  %v212 = vpop.xlane.xlu0 %211
  %213 = vadd.xlane.f32.xlu0 %v92
  %v214 = vpop.xlane.xlu0 %213
  %215 = vadd.xlane.f32.xlu0 %v93
  %v216 = vpop.xlane.xlu0 %215
  %217 = vadd.xlane.f32.xlu0 %v94
  %v218 = vpop.xlane.xlu0 %217
  %219 = vadd.xlane.f32.xlu0 %v95
  %v220 = vpop.xlane.xlu0 %219
  %221 = vadd.xlane.f32.xlu0 %v96
  %v222 = vpop.xlane.xlu0 %221
  %223 = vadd.xlane.f32.xlu0 %v97
  %v224 = vpop.xlane.xlu0 %223
  %225 = vadd.xlane.f32.xlu0 %v98
  %v226 = vpop.xlane.xlu0 %225
  %v227 = vmul.f32 %v35, %v35
  %v228 = vmul.f32 %v36, %v36
  %v229 = vmul.f32 %v37, %v37
  %v230 = vmul.f32 %v38, %v38
  %v231 = vmul.f32 %v39, %v39
  %v232 = vmul.f32 %v40, %v40
  %v233 = vmul.f32 %v41, %v41
  %v234 = vmul.f32 %v42, %v42
  %v235 = vmul.f32 %v43, %v43
  %v236 = vmul.f32 %v44, %v44
  %v237 = vmul.f32 %v45, %v45
  %v238 = vmul.f32 %v46, %v46
  %v239 = vmul.f32 %v47, %v47
  %v240 = vmul.f32 %v48, %v48
  %v241 = vmul.f32 %v49, %v49
  %v242 = vmul.f32 %v50, %v50
  %v243 = vmul.f32 %v51, %v51
  %v244 = vmul.f32 %v52, %v52
  %v245 = vmul.f32 %v53, %v53
  %v246 = vmul.f32 %v54, %v54
  %v247 = vmul.f32 %v55, %v55
  %v248 = vmul.f32 %v56, %v56
  %v249 = vmul.f32 %v57, %v57
  %v250 = vmul.f32 %v58, %v58
  %v251 = vmul.f32 %v59, %v59
  %v252 = vmul.f32 %v60, %v60
  %v253 = vmul.f32 %v61, %v61
  %v254 = vmul.f32 %v62, %v62
  %v255 = vmul.f32 %v63, %v63
  %v256 = vmul.f32 %v64, %v64
  %v257 = vmul.f32 %v65, %v65
  %v258 = vmul.f32 %v66, %v66
  %v259 = vmul.f32 %v67, %v67
  %v260 = vmul.f32 %v68, %v68
  %v261 = vmul.f32 %v69, %v69
  %v262 = vmul.f32 %v70, %v70
  %v263 = vmul.f32 %v71, %v71
  %v264 = vmul.f32 %v72, %v72
  %v265 = vmul.f32 %v73, %v73
  %v266 = vmul.f32 %v74, %v74
  %v267 = vmul.f32 %v75, %v75
  %v268 = vmul.f32 %v76, %v76
  %v269 = vmul.f32 %v77, %v77
  %v270 = vmul.f32 %v78, %v78
  %v271 = vmul.f32 %v79, %v79
  %v272 = vmul.f32 %v80, %v80
  %v273 = vmul.f32 %v81, %v81
  %v274 = vmul.f32 %v82, %v82
  %v275 = vmul.f32 %v83, %v83
  %v276 = vmul.f32 %v84, %v84
  %v277 = vmul.f32 %v85, %v85
  %v278 = vmul.f32 %v86, %v86
  %v279 = vmul.f32 %v87, %v87
  %v280 = vmul.f32 %v88, %v88
  %v281 = vmul.f32 %v89, %v89
  %v282 = vmul.f32 %v90, %v90
  %v283 = vmul.f32 %v91, %v91
  %v284 = vmul.f32 %v92, %v92
  %v285 = vmul.f32 %v93, %v93
  %v286 = vmul.f32 %v94, %v94
  %v287 = vmul.f32 %v95, %v95
  %v288 = vmul.f32 %v96, %v96
  %v289 = vmul.f32 %v97, %v97
  %v290 = vmul.f32 %v98, %v98
  %291 = vadd.xlane.f32.xlu0 %v227
  %v292 = vpop.xlane.xlu0 %291
  %293 = vadd.xlane.f32.xlu0 %v228
  %v294 = vpop.xlane.xlu0 %293
  %295 = vadd.xlane.f32.xlu0 %v229
  %v296 = vpop.xlane.xlu0 %295
  %297 = vadd.xlane.f32.xlu0 %v230
  %v298 = vpop.xlane.xlu0 %297
  %299 = vadd.xlane.f32.xlu0 %v231
  %v300 = vpop.xlane.xlu0 %299
  %301 = vadd.xlane.f32.xlu0 %v232
  %v302 = vpop.xlane.xlu0 %301
  %303 = vadd.xlane.f32.xlu0 %v233
  %v304 = vpop.xlane.xlu0 %303
  %305 = vadd.xlane.f32.xlu0 %v234
  %v306 = vpop.xlane.xlu0 %305
  %307 = vadd.xlane.f32.xlu0 %v235
  %v308 = vpop.xlane.xlu0 %307
  %309 = vadd.xlane.f32.xlu0 %v236
  %v310 = vpop.xlane.xlu0 %309
  %311 = vadd.xlane.f32.xlu0 %v237
  %v312 = vpop.xlane.xlu0 %311
  %313 = vadd.xlane.f32.xlu0 %v238
  %v314 = vpop.xlane.xlu0 %313
  %315 = vadd.xlane.f32.xlu0 %v239
  %v316 = vpop.xlane.xlu0 %315
  %317 = vadd.xlane.f32.xlu0 %v240
  %v318 = vpop.xlane.xlu0 %317
  %319 = vadd.xlane.f32.xlu0 %v241
  %v320 = vpop.xlane.xlu0 %319
  %321 = vadd.xlane.f32.xlu0 %v242
  %v322 = vpop.xlane.xlu0 %321
  %323 = vadd.xlane.f32.xlu0 %v243
  %v324 = vpop.xlane.xlu0 %323
  %325 = vadd.xlane.f32.xlu0 %v244
  %v326 = vpop.xlane.xlu0 %325
  %327 = vadd.xlane.f32.xlu0 %v245
  %v328 = vpop.xlane.xlu0 %327
  %329 = vadd.xlane.f32.xlu0 %v246
  %v330 = vpop.xlane.xlu0 %329
  %331 = vadd.xlane.f32.xlu0 %v247
  %v332 = vpop.xlane.xlu0 %331
  %333 = vadd.xlane.f32.xlu0 %v248
  %v334 = vpop.xlane.xlu0 %333
  %335 = vadd.xlane.f32.xlu0 %v249
  %v336 = vpop.xlane.xlu0 %335
  %337 = vadd.xlane.f32.xlu0 %v250
  %v338 = vpop.xlane.xlu0 %337
  %339 = vadd.xlane.f32.xlu0 %v251
  %v340 = vpop.xlane.xlu0 %339
  %341 = vadd.xlane.f32.xlu0 %v252
  %v342 = vpop.xlane.xlu0 %341
  %343 = vadd.xlane.f32.xlu0 %v253
  %v344 = vpop.xlane.xlu0 %343
  %345 = vadd.xlane.f32.xlu0 %v254
  %v346 = vpop.xlane.xlu0 %345
  %347 = vadd.xlane.f32.xlu0 %v255
  %v348 = vpop.xlane.xlu0 %347
  %349 = vadd.xlane.f32.xlu0 %v256
  %v350 = vpop.xlane.xlu0 %349
  %351 = vadd.xlane.f32.xlu0 %v257
  %v352 = vpop.xlane.xlu0 %351
  %353 = vadd.xlane.f32.xlu0 %v258
  %v354 = vpop.xlane.xlu0 %353
  %355 = vadd.xlane.f32.xlu0 %v259
  %v356 = vpop.xlane.xlu0 %355
  %357 = vadd.xlane.f32.xlu0 %v260
  %v358 = vpop.xlane.xlu0 %357
  %359 = vadd.xlane.f32.xlu0 %v261
  %v360 = vpop.xlane.xlu0 %359
  %361 = vadd.xlane.f32.xlu0 %v262
  %v362 = vpop.xlane.xlu0 %361
  %363 = vadd.xlane.f32.xlu0 %v263
  %v364 = vpop.xlane.xlu0 %363
  %365 = vadd.xlane.f32.xlu0 %v264
  %v366 = vpop.xlane.xlu0 %365
  %367 = vadd.xlane.f32.xlu0 %v265
  %v368 = vpop.xlane.xlu0 %367
  %369 = vadd.xlane.f32.xlu0 %v266
  %v370 = vpop.xlane.xlu0 %369
  %371 = vadd.xlane.f32.xlu0 %v267
  %v372 = vpop.xlane.xlu0 %371
  %373 = vadd.xlane.f32.xlu0 %v268
  %v374 = vpop.xlane.xlu0 %373
  %375 = vadd.xlane.f32.xlu0 %v269
  %v376 = vpop.xlane.xlu0 %375
  %377 = vadd.xlane.f32.xlu0 %v270
  %v378 = vpop.xlane.xlu0 %377
  %379 = vadd.xlane.f32.xlu0 %v271
  %v380 = vpop.xlane.xlu0 %379
  %381 = vadd.xlane.f32.xlu0 %v272
  %v382 = vpop.xlane.xlu0 %381
  %383 = vadd.xlane.f32.xlu0 %v273
  %v384 = vpop.xlane.xlu0 %383
  %385 = vadd.xlane.f32.xlu0 %v274
  %v386 = vpop.xlane.xlu0 %385
  %387 = vadd.xlane.f32.xlu0 %v275
  %v388 = vpop.xlane.xlu0 %387
  %389 = vadd.xlane.f32.xlu0 %v276
  %v390 = vpop.xlane.xlu0 %389
  %391 = vadd.xlane.f32.xlu0 %v277
  %v392 = vpop.xlane.xlu0 %391
  %393 = vadd.xlane.f32.xlu0 %v278
  %v394 = vpop.xlane.xlu0 %393
  %395 = vadd.xlane.f32.xlu0 %v279
  %v396 = vpop.xlane.xlu0 %395
  %397 = vadd.xlane.f32.xlu0 %v280
  %v398 = vpop.xlane.xlu0 %397
  %399 = vadd.xlane.f32.xlu0 %v281
  %v400 = vpop.xlane.xlu0 %399
  %401 = vadd.xlane.f32.xlu0 %v282
  %v402 = vpop.xlane.xlu0 %401
  %403 = vadd.xlane.f32.xlu0 %v283
  %v404 = vpop.xlane.xlu0 %403
  %405 = vadd.xlane.f32.xlu0 %v284
  %v406 = vpop.xlane.xlu0 %405
  %407 = vadd.xlane.f32.xlu0 %v285
  %v408 = vpop.xlane.xlu0 %407
  %409 = vadd.xlane.f32.xlu0 %v286
  %v410 = vpop.xlane.xlu0 %409
  %411 = vadd.xlane.f32.xlu0 %v287
  %v412 = vpop.xlane.xlu0 %411
  %413 = vadd.xlane.f32.xlu0 %v288
  %v414 = vpop.xlane.xlu0 %413
  %415 = vadd.xlane.f32.xlu0 %v289
  %v416 = vpop.xlane.xlu0 %415
  %417 = vadd.xlane.f32.xlu0 %v290
  %v418 = vpop.xlane.xlu0 %417
  %v419 = vmul.f32 %v100, 0.0078125
  %v420 = vmul.f32 %v102, 0.0078125
  %v421 = vmul.f32 %v104, 0.0078125
  %v422 = vmul.f32 %v106, 0.0078125
  %v423 = vmul.f32 %v108, 0.0078125
  %v424 = vmul.f32 %v110, 0.0078125
  %v425 = vmul.f32 %v112, 0.0078125
  %v426 = vmul.f32 %v114, 0.0078125
  %v427 = vmul.f32 %v116, 0.0078125
  %v428 = vmul.f32 %v118, 0.0078125
  %v429 = vmul.f32 %v120, 0.0078125
  %v430 = vmul.f32 %v122, 0.0078125
  %v431 = vmul.f32 %v124, 0.0078125
  %v432 = vmul.f32 %v126, 0.0078125
  %v433 = vmul.f32 %v128, 0.0078125
  %v434 = vmul.f32 %v130, 0.0078125
  %v435 = vmul.f32 %v132, 0.0078125
  %v436 = vmul.f32 %v134, 0.0078125
  %v437 = vmul.f32 %v136, 0.0078125
  %v438 = vmul.f32 %v138, 0.0078125
  %v439 = vmul.f32 %v140, 0.0078125
  %v440 = vmul.f32 %v142, 0.0078125
  %v441 = vmul.f32 %v144, 0.0078125
  %v442 = vmul.f32 %v146, 0.0078125
  %v443 = vmul.f32 %v148, 0.0078125
  %v444 = vmul.f32 %v150, 0.0078125
  %v445 = vmul.f32 %v152, 0.0078125
  %v446 = vmul.f32 %v154, 0.0078125
  %v447 = vmul.f32 %v156, 0.0078125
  %v448 = vmul.f32 %v158, 0.0078125
  %v449 = vmul.f32 %v160, 0.0078125
  %v450 = vmul.f32 %v162, 0.0078125
  %v451 = vmul.f32 %v164, 0.0078125
  %v452 = vmul.f32 %v166, 0.0078125
  %v453 = vmul.f32 %v168, 0.0078125
  %v454 = vmul.f32 %v170, 0.0078125
  %v455 = vmul.f32 %v172, 0.0078125
  %v456 = vmul.f32 %v174, 0.0078125
  %v457 = vmul.f32 %v176, 0.0078125
  %v458 = vmul.f32 %v178, 0.0078125
  %v459 = vmul.f32 %v180, 0.0078125
  %v460 = vmul.f32 %v182, 0.0078125
  %v461 = vmul.f32 %v184, 0.0078125
  %v462 = vmul.f32 %v186, 0.0078125
  %v463 = vmul.f32 %v188, 0.0078125
  %v464 = vmul.f32 %v190, 0.0078125
  %v465 = vmul.f32 %v192, 0.0078125
  %v466 = vmul.f32 %v194, 0.0078125
  %v467 = vmul.f32 %v196, 0.0078125
  %v468 = vmul.f32 %v198, 0.0078125
  %v469 = vmul.f32 %v200, 0.0078125
  %v470 = vmul.f32 %v202, 0.0078125
  %v471 = vmul.f32 %v204, 0.0078125
  %v472 = vmul.f32 %v206, 0.0078125
  %v473 = vmul.f32 %v208, 0.0078125
  %v474 = vmul.f32 %v210, 0.0078125
  %v475 = vmul.f32 %v212, 0.0078125
  %v476 = vmul.f32 %v214, 0.0078125
  %v477 = vmul.f32 %v216, 0.0078125
  %v478 = vmul.f32 %v218, 0.0078125
  %v479 = vmul.f32 %v220, 0.0078125
  %v480 = vmul.f32 %v222, 0.0078125
  %v481 = vmul.f32 %v224, 0.0078125
  %v482 = vmul.f32 %v226, 0.0078125
  %v483 = vmul.f32 %v292, 0.0078125
  %v484 = vmul.f32 %v294, 0.0078125
  %v485 = vmul.f32 %v296, 0.0078125
  %v486 = vmul.f32 %v298, 0.0078125
  %v487 = vmul.f32 %v300, 0.0078125
  %v488 = vmul.f32 %v302, 0.0078125
  %v489 = vmul.f32 %v304, 0.0078125
  %v490 = vmul.f32 %v306, 0.0078125
  %v491 = vmul.f32 %v308, 0.0078125
  %v492 = vmul.f32 %v310, 0.0078125
  %v493 = vmul.f32 %v312, 0.0078125
  %v494 = vmul.f32 %v314, 0.0078125
  %v495 = vmul.f32 %v316, 0.0078125
  %v496 = vmul.f32 %v318, 0.0078125
  %v497 = vmul.f32 %v320, 0.0078125
  %v498 = vmul.f32 %v322, 0.0078125
  %v499 = vmul.f32 %v324, 0.0078125
  %v500 = vmul.f32 %v326, 0.0078125
  %v501 = vmul.f32 %v328, 0.0078125
  %v502 = vmul.f32 %v330, 0.0078125
  %v503 = vmul.f32 %v332, 0.0078125
  %v504 = vmul.f32 %v334, 0.0078125
  %v505 = vmul.f32 %v336, 0.0078125
  %v506 = vmul.f32 %v338, 0.0078125
  %v507 = vmul.f32 %v340, 0.0078125
  %v508 = vmul.f32 %v342, 0.0078125
  %v509 = vmul.f32 %v344, 0.0078125
  %v510 = vmul.f32 %v346, 0.0078125
  %v511 = vmul.f32 %v348, 0.0078125
  %v512 = vmul.f32 %v350, 0.0078125
  %v513 = vmul.f32 %v352, 0.0078125
  %v514 = vmul.f32 %v354, 0.0078125
  %v515 = vmul.f32 %v356, 0.0078125
  %v516 = vmul.f32 %v358, 0.0078125
  %v517 = vmul.f32 %v360, 0.0078125
  %v518 = vmul.f32 %v362, 0.0078125
  %v519 = vmul.f32 %v364, 0.0078125
  %v520 = vmul.f32 %v366, 0.0078125
  %v521 = vmul.f32 %v368, 0.0078125
  %v522 = vmul.f32 %v370, 0.0078125
  %v523 = vmul.f32 %v372, 0.0078125
  %v524 = vmul.f32 %v374, 0.0078125
  %v525 = vmul.f32 %v376, 0.0078125
  %v526 = vmul.f32 %v378, 0.0078125
  %v527 = vmul.f32 %v380, 0.0078125
  %v528 = vmul.f32 %v382, 0.0078125
  %v529 = vmul.f32 %v384, 0.0078125
  %v530 = vmul.f32 %v386, 0.0078125
  %v531 = vmul.f32 %v388, 0.0078125
  %v532 = vmul.f32 %v390, 0.0078125
  %v533 = vmul.f32 %v392, 0.0078125
  %v534 = vmul.f32 %v394, 0.0078125
  %v535 = vmul.f32 %v396, 0.0078125
  %v536 = vmul.f32 %v398, 0.0078125
  %v537 = vmul.f32 %v400, 0.0078125
  %v538 = vmul.f32 %v402, 0.0078125
  %v539 = vmul.f32 %v404, 0.0078125
  %v540 = vmul.f32 %v406, 0.0078125
  %v541 = vmul.f32 %v408, 0.0078125
  %v542 = vmul.f32 %v410, 0.0078125
  %v543 = vmul.f32 %v412, 0.0078125
  %v544 = vmul.f32 %v414, 0.0078125
  %v545 = vmul.f32 %v416, 0.0078125
  %v546 = vmul.f32 %v418, 0.0078125
  %v547 = vmul.f32 %v419, %v419
  %v548 = vmul.f32 %v420, %v420
  %v549 = vmul.f32 %v421, %v421
  %v550 = vmul.f32 %v422, %v422
  %v551 = vmul.f32 %v423, %v423
  %v552 = vmul.f32 %v424, %v424
  %v553 = vmul.f32 %v425, %v425
  %v554 = vmul.f32 %v426, %v426
  %v555 = vmul.f32 %v427, %v427
  %v556 = vmul.f32 %v428, %v428
  %v557 = vmul.f32 %v429, %v429
  %v558 = vmul.f32 %v430, %v430
  %v559 = vmul.f32 %v431, %v431
  %v560 = vmul.f32 %v432, %v432
  %v561 = vmul.f32 %v433, %v433
  %v562 = vmul.f32 %v434, %v434
  %v563 = vmul.f32 %v435, %v435
  %v564 = vmul.f32 %v436, %v436
  %v565 = vmul.f32 %v437, %v437
  %v566 = vmul.f32 %v438, %v438
  %v567 = vmul.f32 %v439, %v439
  %v568 = vmul.f32 %v440, %v440
  %v569 = vmul.f32 %v441, %v441
  %v570 = vmul.f32 %v442, %v442
  %v571 = vmul.f32 %v443, %v443
  %v572 = vmul.f32 %v444, %v444
  %v573 = vmul.f32 %v445, %v445
  %v574 = vmul.f32 %v446, %v446
  %v575 = vmul.f32 %v447, %v447
  %v576 = vmul.f32 %v448, %v448
  %v577 = vmul.f32 %v449, %v449
  %v578 = vmul.f32 %v450, %v450
  %v579 = vmul.f32 %v451, %v451
  %v580 = vmul.f32 %v452, %v452
  %v581 = vmul.f32 %v453, %v453
  %v582 = vmul.f32 %v454, %v454
  %v583 = vmul.f32 %v455, %v455
  %v584 = vmul.f32 %v456, %v456
  %v585 = vmul.f32 %v457, %v457
  %v586 = vmul.f32 %v458, %v458
  %v587 = vmul.f32 %v459, %v459
  %v588 = vmul.f32 %v460, %v460
  %v589 = vmul.f32 %v461, %v461
  %v590 = vmul.f32 %v462, %v462
  %v591 = vmul.f32 %v463, %v463
  %v592 = vmul.f32 %v464, %v464
  %v593 = vmul.f32 %v465, %v465
  %v594 = vmul.f32 %v466, %v466
  %v595 = vmul.f32 %v467, %v467
  %v596 = vmul.f32 %v468, %v468
  %v597 = vmul.f32 %v469, %v469
  %v598 = vmul.f32 %v470, %v470
  %v599 = vmul.f32 %v471, %v471
  %v600 = vmul.f32 %v472, %v472
  %v601 = vmul.f32 %v473, %v473
  %v602 = vmul.f32 %v474, %v474
  %v603 = vmul.f32 %v475, %v475
  %v604 = vmul.f32 %v476, %v476
  %v605 = vmul.f32 %v477, %v477
  %v606 = vmul.f32 %v478, %v478
  %v607 = vmul.f32 %v479, %v479
  %v608 = vmul.f32 %v480, %v480
  %v609 = vmul.f32 %v481, %v481
  %v610 = vmul.f32 %v482, %v482
  %v611 = vsub.f32 %v483, %v547
  %v612 = vsub.f32 %v484, %v548
  %v613 = vsub.f32 %v485, %v549
  %v614 = vsub.f32 %v486, %v550
  %v615 = vsub.f32 %v487, %v551
  %v616 = vsub.f32 %v488, %v552
  %v617 = vsub.f32 %v489, %v553
  %v618 = vsub.f32 %v490, %v554
  %v619 = vsub.f32 %v491, %v555
  %v620 = vsub.f32 %v492, %v556
  %v621 = vsub.f32 %v493, %v557
  %v622 = vsub.f32 %v494, %v558
  %v623 = vsub.f32 %v495, %v559
  %v624 = vsub.f32 %v496, %v560
  %v625 = vsub.f32 %v497, %v561
  %v626 = vsub.f32 %v498, %v562
  %v627 = vsub.f32 %v499, %v563
  %v628 = vsub.f32 %v500, %v564
  %v629 = vsub.f32 %v501, %v565
  %v630 = vsub.f32 %v502, %v566
  %v631 = vsub.f32 %v503, %v567
  %v632 = vsub.f32 %v504, %v568
  %v633 = vsub.f32 %v505, %v569
  %v634 = vsub.f32 %v506, %v570
  %v635 = vsub.f32 %v507, %v571
  %v636 = vsub.f32 %v508, %v572
  %v637 = vsub.f32 %v509, %v573
  %v638 = vsub.f32 %v510, %v574
  %v639 = vsub.f32 %v511, %v575
  %v640 = vsub.f32 %v512, %v576
  %v641 = vsub.f32 %v513, %v577
  %v642 = vsub.f32 %v514, %v578
  %v643 = vsub.f32 %v515, %v579
  %v644 = vsub.f32 %v516, %v580
  %v645 = vsub.f32 %v517, %v581
  %v646 = vsub.f32 %v518, %v582
  %v647 = vsub.f32 %v519, %v583
  %v648 = vsub.f32 %v520, %v584
  %v649 = vsub.f32 %v521, %v585
  %v650 = vsub.f32 %v522, %v586
  %v651 = vsub.f32 %v523, %v587
  %v652 = vsub.f32 %v524, %v588
  %v653 = vsub.f32 %v525, %v589
  %v654 = vsub.f32 %v526, %v590
  %v655 = vsub.f32 %v527, %v591
  %v656 = vsub.f32 %v528, %v592
  %v657 = vsub.f32 %v529, %v593
  %v658 = vsub.f32 %v530, %v594
  %v659 = vsub.f32 %v531, %v595
  %v660 = vsub.f32 %v532, %v596
  %v661 = vsub.f32 %v533, %v597
  %v662 = vsub.f32 %v534, %v598
  %v663 = vsub.f32 %v535, %v599
  %v664 = vsub.f32 %v536, %v600
  %v665 = vsub.f32 %v537, %v601
  %v666 = vsub.f32 %v538, %v602
  %v667 = vsub.f32 %v539, %v603
  %v668 = vsub.f32 %v540, %v604
  %v669 = vsub.f32 %v541, %v605
  %v670 = vsub.f32 %v542, %v606
  %v671 = vsub.f32 %v543, %v607
  %v672 = vsub.f32 %v544, %v608
  %v673 = vsub.f32 %v545, %v609
  %v674 = vsub.f32 %v546, %v610
  %v675 = vmax.f32 %v611, 0.0
  %v676 = vmax.f32 %v612, 0.0
  %v677 = vmax.f32 %v613, 0.0
  %v678 = vmax.f32 %v614, 0.0
  %v679 = vmax.f32 %v615, 0.0
  %v680 = vmax.f32 %v616, 0.0
  %v681 = vmax.f32 %v617, 0.0
  %v682 = vmax.f32 %v618, 0.0
  %v683 = vmax.f32 %v619, 0.0
  %v684 = vmax.f32 %v620, 0.0
  %v685 = vmax.f32 %v621, 0.0
  %v686 = vmax.f32 %v622, 0.0
  %v687 = vmax.f32 %v623, 0.0
  %v688 = vmax.f32 %v624, 0.0
  %v689 = vmax.f32 %v625, 0.0
  %v690 = vmax.f32 %v626, 0.0
  %v691 = vmax.f32 %v627, 0.0
  %v692 = vmax.f32 %v628, 0.0
  %v693 = vmax.f32 %v629, 0.0
  %v694 = vmax.f32 %v630, 0.0
  %v695 = vmax.f32 %v631, 0.0
  %v696 = vmax.f32 %v632, 0.0
  %v697 = vmax.f32 %v633, 0.0
  %v698 = vmax.f32 %v634, 0.0
  %v699 = vmax.f32 %v635, 0.0
  %v700 = vmax.f32 %v636, 0.0
  %v701 = vmax.f32 %v637, 0.0
  %v702 = vmax.f32 %v638, 0.0
  %v703 = vmax.f32 %v639, 0.0
  %v704 = vmax.f32 %v640, 0.0
  %v705 = vmax.f32 %v641, 0.0
  %v706 = vmax.f32 %v642, 0.0
  %v707 = vmax.f32 %v643, 0.0
  %v708 = vmax.f32 %v644, 0.0
  %v709 = vmax.f32 %v645, 0.0
  %v710 = vmax.f32 %v646, 0.0
  %v711 = vmax.f32 %v647, 0.0
  %v712 = vmax.f32 %v648, 0.0
  %v713 = vmax.f32 %v649, 0.0
  %v714 = vmax.f32 %v650, 0.0
  %v715 = vmax.f32 %v651, 0.0
  %v716 = vmax.f32 %v652, 0.0
  %v717 = vmax.f32 %v653, 0.0
  %v718 = vmax.f32 %v654, 0.0
  %v719 = vmax.f32 %v655, 0.0
  %v720 = vmax.f32 %v656, 0.0
  %v721 = vmax.f32 %v657, 0.0
  %v722 = vmax.f32 %v658, 0.0
  %v723 = vmax.f32 %v659, 0.0
  %v724 = vmax.f32 %v660, 0.0
  %v725 = vmax.f32 %v661, 0.0
  %v726 = vmax.f32 %v662, 0.0
  %v727 = vmax.f32 %v663, 0.0
  %v728 = vmax.f32 %v664, 0.0
  %v729 = vmax.f32 %v665, 0.0
  %v730 = vmax.f32 %v666, 0.0
  %v731 = vmax.f32 %v667, 0.0
  %v732 = vmax.f32 %v668, 0.0
  %v733 = vmax.f32 %v669, 0.0
  %v734 = vmax.f32 %v670, 0.0
  %v735 = vmax.f32 %v671, 0.0
  %v736 = vmax.f32 %v672, 0.0
  %v737 = vmax.f32 %v673, 0.0
  %v738 = vmax.f32 %v674, 0.0
  %v739 = vadd.f32 %v675, 1e-05
  %v740 = vadd.f32 %v676, 1e-05
  %v741 = vadd.f32 %v677, 1e-05
  %v742 = vadd.f32 %v678, 1e-05
  %v743 = vadd.f32 %v679, 1e-05
  %v744 = vadd.f32 %v680, 1e-05
  %v745 = vadd.f32 %v681, 1e-05
  %v746 = vadd.f32 %v682, 1e-05
  %v747 = vadd.f32 %v683, 1e-05
  %v748 = vadd.f32 %v684, 1e-05
  %v749 = vadd.f32 %v685, 1e-05
  %v750 = vadd.f32 %v686, 1e-05
  %v751 = vadd.f32 %v687, 1e-05
  %v752 = vadd.f32 %v688, 1e-05
  %v753 = vadd.f32 %v689, 1e-05
  %v754 = vadd.f32 %v690, 1e-05
  %v755 = vadd.f32 %v691, 1e-05
  %v756 = vadd.f32 %v692, 1e-05
  %v757 = vadd.f32 %v693, 1e-05
  %v758 = vadd.f32 %v694, 1e-05
  %v759 = vadd.f32 %v695, 1e-05
  %v760 = vadd.f32 %v696, 1e-05
  %v761 = vadd.f32 %v697, 1e-05
  %v762 = vadd.f32 %v698, 1e-05
  %v763 = vadd.f32 %v699, 1e-05
  %v764 = vadd.f32 %v700, 1e-05
  %v765 = vadd.f32 %v701, 1e-05
  %v766 = vadd.f32 %v702, 1e-05
  %v767 = vadd.f32 %v703, 1e-05
  %v768 = vadd.f32 %v704, 1e-05
  %v769 = vadd.f32 %v705, 1e-05
  %v770 = vadd.f32 %v706, 1e-05
  %v771 = vadd.f32 %v707, 1e-05
  %v772 = vadd.f32 %v708, 1e-05
  %v773 = vadd.f32 %v709, 1e-05
  %v774 = vadd.f32 %v710, 1e-05
  %v775 = vadd.f32 %v711, 1e-05
  %v776 = vadd.f32 %v712, 1e-05
  %v777 = vadd.f32 %v713, 1e-05
  %v778 = vadd.f32 %v714, 1e-05
  %v779 = vadd.f32 %v715, 1e-05
  %v780 = vadd.f32 %v716, 1e-05
  %v781 = vadd.f32 %v717, 1e-05
  %v782 = vadd.f32 %v718, 1e-05
  %v783 = vadd.f32 %v719, 1e-05
  %v784 = vadd.f32 %v720, 1e-05
  %v785 = vadd.f32 %v721, 1e-05
  %v786 = vadd.f32 %v722, 1e-05
  %v787 = vadd.f32 %v723, 1e-05
  %v788 = vadd.f32 %v724, 1e-05
  %v789 = vadd.f32 %v725, 1e-05
  %v790 = vadd.f32 %v726, 1e-05
  %v791 = vadd.f32 %v727, 1e-05
  %v792 = vadd.f32 %v728, 1e-05
  %v793 = vadd.f32 %v729, 1e-05
  %v794 = vadd.f32 %v730, 1e-05
  %v795 = vadd.f32 %v731, 1e-05
  %v796 = vadd.f32 %v732, 1e-05
  %v797 = vadd.f32 %v733, 1e-05
  %v798 = vadd.f32 %v734, 1e-05
  %v799 = vadd.f32 %v735, 1e-05
  %v800 = vadd.f32 %v736, 1e-05
  %v801 = vadd.f32 %v737, 1e-05
  %v802 = vadd.f32 %v738, 1e-05
  %v803 = vrsqrt.pop %v739
  %v804 = vrsqrt.pop %v740
  %v805 = vrsqrt.pop %v741
  %v806 = vrsqrt.pop %v742
  %v807 = vrsqrt.pop %v743
  %v808 = vrsqrt.pop %v744
  %v809 = vrsqrt.pop %v745
  %v810 = vrsqrt.pop %v746
  %v811 = vrsqrt.pop %v747
  %v812 = vrsqrt.pop %v748
  %v813 = vrsqrt.pop %v749
  %v814 = vrsqrt.pop %v750
  %v815 = vrsqrt.pop %v751
  %v816 = vrsqrt.pop %v752
  %v817 = vrsqrt.pop %v753
  %v818 = vrsqrt.pop %v754
  %v819 = vrsqrt.pop %v755
  %v820 = vrsqrt.pop %v756
  %v821 = vrsqrt.pop %v757
  %v822 = vrsqrt.pop %v758
  %v823 = vrsqrt.pop %v759
  %v824 = vrsqrt.pop %v760
  %v825 = vrsqrt.pop %v761
  %v826 = vrsqrt.pop %v762
  %v827 = vrsqrt.pop %v763
  %v828 = vrsqrt.pop %v764
  %v829 = vrsqrt.pop %v765
  %v830 = vrsqrt.pop %v766
  %v831 = vrsqrt.pop %v767
  %v832 = vrsqrt.pop %v768
  %v833 = vrsqrt.pop %v769
  %v834 = vrsqrt.pop %v770
  %v835 = vrsqrt.pop %v771
  %v836 = vrsqrt.pop %v772
  %v837 = vrsqrt.pop %v773
  %v838 = vrsqrt.pop %v774
  %v839 = vrsqrt.pop %v775
  %v840 = vrsqrt.pop %v776
  %v841 = vrsqrt.pop %v777
  %v842 = vrsqrt.pop %v778
  %v843 = vrsqrt.pop %v779
  %v844 = vrsqrt.pop %v780
  %v845 = vrsqrt.pop %v781
  %v846 = vrsqrt.pop %v782
  %v847 = vrsqrt.pop %v783
  %v848 = vrsqrt.pop %v784
  %v849 = vrsqrt.pop %v785
  %v850 = vrsqrt.pop %v786
  %v851 = vrsqrt.pop %v787
  %v852 = vrsqrt.pop %v788
  %v853 = vrsqrt.pop %v789
  %v854 = vrsqrt.pop %v790
  %v855 = vrsqrt.pop %v791
  %v856 = vrsqrt.pop %v792
  %v857 = vrsqrt.pop %v793
  %v858 = vrsqrt.pop %v794
  %v859 = vrsqrt.pop %v795
  %v860 = vrsqrt.pop %v796
  %v861 = vrsqrt.pop %v797
  %v862 = vrsqrt.pop %v798
  %v863 = vrsqrt.pop %v799
  %v864 = vrsqrt.pop %v800
  %v865 = vrsqrt.pop %v801
  %v866 = vrsqrt.pop %v802
  %v867 = vld [vmem:[#allocation2] sm:$0xff]
  %v868 = vmul.f32 %v35, %v803
  %v869 = vmul.f32 %v36, %v804
  %v870 = vmul.f32 %v37, %v805
  %v871 = vmul.f32 %v38, %v806
  %v872 = vmul.f32 %v39, %v807
  %v873 = vmul.f32 %v40, %v808
  %v874 = vmul.f32 %v41, %v809
  %v875 = vmul.f32 %v42, %v810
  %v876 = vmul.f32 %v43, %v811
  %v877 = vmul.f32 %v44, %v812
  %v878 = vmul.f32 %v45, %v813
  %v879 = vmul.f32 %v46, %v814
  %v880 = vmul.f32 %v47, %v815
  %v881 = vmul.f32 %v48, %v816
  %v882 = vmul.f32 %v49, %v817
  %v883 = vmul.f32 %v50, %v818
  %v884 = vmul.f32 %v51, %v819
  %v885 = vmul.f32 %v52, %v820
  %v886 = vmul.f32 %v53, %v821
  %v887 = vmul.f32 %v54, %v822
  %v888 = vmul.f32 %v55, %v823
  %v889 = vmul.f32 %v56, %v824
  %v890 = vmul.f32 %v57, %v825
  %v891 = vmul.f32 %v58, %v826
  %v892 = vmul.f32 %v59, %v827
  %v893 = vmul.f32 %v60, %v828
  %v894 = vmul.f32 %v61, %v829
  %v895 = vmul.f32 %v62, %v830
  %v896 = vmul.f32 %v63, %v831
  %v897 = vmul.f32 %v64, %v832
  %v898 = vmul.f32 %v65, %v833
  %v899 = vmul.f32 %v66, %v834
  %v900 = vmul.f32 %v67, %v835
  %v901 = vmul.f32 %v68, %v836
  %v902 = vmul.f32 %v69, %v837
  %v903 = vmul.f32 %v70, %v838
  %v904 = vmul.f32 %v71, %v839
  %v905 = vmul.f32 %v72, %v840
  %v906 = vmul.f32 %v73, %v841
  %v907 = vmul.f32 %v74, %v842
  %v908 = vmul.f32 %v75, %v843
  %v909 = vmul.f32 %v76, %v844
  %v910 = vmul.f32 %v77, %v845
  %v911 = vmul.f32 %v78, %v846
  %v912 = vmul.f32 %v79, %v847
  %v913 = vmul.f32 %v80, %v848
  %v914 = vmul.f32 %v81, %v849
  %v915 = vmul.f32 %v82, %v850
  %v916 = vmul.f32 %v83, %v851
  %v917 = vmul.f32 %v84, %v852
  %v918 = vmul.f32 %v85, %v853
  %v919 = vmul.f32 %v86, %v854
  %v920 = vmul.f32 %v87, %v855
  %v921 = vmul.f32 %v88, %v856
  %v922 = vmul.f32 %v89, %v857
  %v923 = vmul.f32 %v90, %v858
  %v924 = vmul.f32 %v91, %v859
  %v925 = vmul.f32 %v92, %v860
  %v926 = vmul.f32 %v93, %v861
  %v927 = vmul.f32 %v94, %v862
  %v928 = vmul.f32 %v95, %v863
  %v929 = vmul.f32 %v96, %v864
  %v930 = vmul.f32 %v97, %v865
  %v931 = vmul.f32 %v98, %v866
  %v932 = vadd.f32 %v868, %v869
  %v933 = vadd.f32 %v932, %v870
  %v934 = vadd.f32 %v933, %v871
  %v935 = vadd.f32 %v934, %v872
  %v936 = vadd.f32 %v935, %v873
  %v937 = vadd.f32 %v936, %v874
  %v938 = vadd.f32 %v937, %v875
  %v939 = vrot.slane %v938, 4
  %v940 = vadd.f32 %v938, %v939
  %v941 = vrot.slane %v940, 2
  %v942 = vadd.f32 %v940, %v941
  %v943 = vrot.slane %v942, 1
  %v944 = vadd.f32 %v942, %v943
  %v945 = vadd.f32 %v876, %v877
  %v946 = vadd.f32 %v945, %v878
  %v947 = vadd.f32 %v946, %v879
  %v948 = vadd.f32 %v947, %v880
  %v949 = vadd.f32 %v948, %v881
  %v950 = vadd.f32 %v949, %v882
  %v951 = vadd.f32 %v950, %v883
  %v952 = vrot.slane %v951, 4
  %v953 = vadd.f32 %v951, %v952
  %v954 = vrot.slane %v953, 2
  %v955 = vadd.f32 %v953, %v954
  %v956 = vrot.slane %v955, 1
  %v957 = vadd.f32 %v955, %v956
  %v958 = vadd.f32 %v884, %v885
  %v959 = vadd.f32 %v958, %v886
  %v960 = vadd.f32 %v959, %v887
  %v961 = vadd.f32 %v960, %v888
  %v962 = vadd.f32 %v961, %v889
  %v963 = vadd.f32 %v962, %v890
  %v964 = vadd.f32 %v963, %v891
  %v965 = vrot.slane %v964, 4
  %v966 = vadd.f32 %v964, %v965
  %v967 = vrot.slane %v966, 2
  %v968 = vadd.f32 %v966, %v967
  %v969 = vrot.slane %v968, 1
  %v970 = vadd.f32 %v968, %v969
  %v971 = vadd.f32 %v892, %v893
  %v972 = vadd.f32 %v971, %v894
  %v973 = vadd.f32 %v972, %v895
  %v974 = vadd.f32 %v973, %v896
  %v975 = vadd.f32 %v974, %v897
  %v976 = vadd.f32 %v975, %v898
  %v977 = vadd.f32 %v976, %v899
  %v978 = vrot.slane %v977, 4
  %v979 = vadd.f32 %v977, %v978
  %v980 = vrot.slane %v979, 2
  %v981 = vadd.f32 %v979, %v980
  %v982 = vrot.slane %v981, 1
  %v983 = vadd.f32 %v981, %v982
  %v984 = vadd.f32 %v900, %v901
  %v985 = vadd.f32 %v984, %v902
  %v986 = vadd.f32 %v985, %v903
  %v987 = vadd.f32 %v986, %v904
  %v988 = vadd.f32 %v987, %v905
  %v989 = vadd.f32 %v988, %v906
  %v990 = vadd.f32 %v989, %v907
  %v991 = vrot.slane %v990, 4
  %v992 = vadd.f32 %v990, %v991
  %v993 = vrot.slane %v992, 2
  %v994 = vadd.f32 %v992, %v993
  %v995 = vrot.slane %v994, 1
  %v996 = vadd.f32 %v994, %v995
  %v997 = vadd.f32 %v908, %v909
  %v998 = vadd.f32 %v997, %v910
  %v999 = vadd.f32 %v998, %v911
  %v1000 = vadd.f32 %v999, %v912
  %v1001 = vadd.f32 %v1000, %v913
  %v1002 = vadd.f32 %v1001, %v914
  %v1003 = vadd.f32 %v1002, %v915
  %v1004 = vrot.slane %v1003, 4
  %v1005 = vadd.f32 %v1003, %v1004
  %v1006 = vrot.slane %v1005, 2
  %v1007 = vadd.f32 %v1005, %v1006
  %v1008 = vrot.slane %v1007, 1
  %v1009 = vadd.f32 %v1007, %v1008
  %v1010 = vadd.f32 %v916, %v917
  %v1011 = vadd.f32 %v1010, %v918
  %v1012 = vadd.f32 %v1011, %v919
  %v1013 = vadd.f32 %v1012, %v920
  %v1014 = vadd.f32 %v1013, %v921
  %v1015 = vadd.f32 %v1014, %v922
  %v1016 = vadd.f32 %v1015, %v923
  %v1017 = vrot.slane %v1016, 4
  %v1018 = vadd.f32 %v1016, %v1017
  %v1019 = vrot.slane %v1018, 2
  %v1020 = vadd.f32 %v1018, %v1019
  %v1021 = vrot.slane %v1020, 1
  %v1022 = vadd.f32 %v1020, %v1021
  %v1023 = vadd.f32 %v924, %v925
  %v1024 = vadd.f32 %v1023, %v926
  %v1025 = vadd.f32 %v1024, %v927
  %v1026 = vadd.f32 %v1025, %v928
  %v1027 = vadd.f32 %v1026, %v929
  %v1028 = vadd.f32 %v1027, %v930
  %v1029 = vadd.f32 %v1028, %v931
  %v1030 = vrot.slane %v1029, 4
  %v1031 = vadd.f32 %v1029, %v1030
  %v1032 = vrot.slane %v1031, 2
  %v1033 = vadd.f32 %v1031, %v1032
  %v1034 = vrot.slane %v1033, 1
  %v1035 = vadd.f32 %v1033, %v1034
  %vm1044 = vcmask 1041409
  %v1045 = vsel %vm1044, %v957, %v944
  %vm1046 = vcmask 1042434
  %v1047 = vsel %vm1046, %v970, %v1045
  %vm1048 = vcmask 1043459
  %v1049 = vsel %vm1048, %v983, %v1047
  %vm1050 = vcmask 1044484
  %v1051 = vsel %vm1050, %v996, %v1049
  %vm1052 = vcmask 1045509
  %v1053 = vsel %vm1052, %v1009, %v1051
  %vm1054 = vcmask 1046534
  %v1055 = vsel %vm1054, %v1022, %v1053
  %vm1056 = vcmask 1047559
  %v1057 = vsel %vm1056, %v1035, %v1055
  %v1059 = vadd.f32 %v867, %v1057
  %1060 = vst [vmem:[#allocation2] sm:$0xff] %v1059
  %v1061 = vld [vmem:[#allocation3] sm:$0xff]
  %v1062 = vmul.f32 %v419, %v803
  %v1063 = vmul.f32 %v420, %v804
  %v1064 = vmul.f32 %v421, %v805
  %v1065 = vmul.f32 %v422, %v806
  %v1066 = vmul.f32 %v423, %v807
  %v1067 = vmul.f32 %v424, %v808
  %v1068 = vmul.f32 %v425, %v809
  %v1069 = vmul.f32 %v426, %v810
  %v1070 = vmul.f32 %v427, %v811
  %v1071 = vmul.f32 %v428, %v812
  %v1072 = vmul.f32 %v429, %v813
  %v1073 = vmul.f32 %v430, %v814
  %v1074 = vmul.f32 %v431, %v815
  %v1075 = vmul.f32 %v432, %v816
  %v1076 = vmul.f32 %v433, %v817
  %v1077 = vmul.f32 %v434, %v818
  %v1078 = vmul.f32 %v435, %v819
  %v1079 = vmul.f32 %v436, %v820
  %v1080 = vmul.f32 %v437, %v821
  %v1081 = vmul.f32 %v438, %v822
  %v1082 = vmul.f32 %v439, %v823
  %v1083 = vmul.f32 %v440, %v824
  %v1084 = vmul.f32 %v441, %v825
  %v1085 = vmul.f32 %v442, %v826
  %v1086 = vmul.f32 %v443, %v827
  %v1087 = vmul.f32 %v444, %v828
  %v1088 = vmul.f32 %v445, %v829
  %v1089 = vmul.f32 %v446, %v830
  %v1090 = vmul.f32 %v447, %v831
  %v1091 = vmul.f32 %v448, %v832
  %v1092 = vmul.f32 %v449, %v833
  %v1093 = vmul.f32 %v450, %v834
  %v1094 = vmul.f32 %v451, %v835
  %v1095 = vmul.f32 %v452, %v836
  %v1096 = vmul.f32 %v453, %v837
  %v1097 = vmul.f32 %v454, %v838
  %v1098 = vmul.f32 %v455, %v839
  %v1099 = vmul.f32 %v456, %v840
  %v1100 = vmul.f32 %v457, %v841
  %v1101 = vmul.f32 %v458, %v842
  %v1102 = vmul.f32 %v459, %v843
  %v1103 = vmul.f32 %v460, %v844
  %v1104 = vmul.f32 %v461, %v845
  %v1105 = vmul.f32 %v462, %v846
  %v1106 = vmul.f32 %v463, %v847
  %v1107 = vmul.f32 %v464, %v848
  %v1108 = vmul.f32 %v465, %v849
  %v1109 = vmul.f32 %v466, %v850
  %v1110 = vmul.f32 %v467, %v851
  %v1111 = vmul.f32 %v468, %v852
  %v1112 = vmul.f32 %v469, %v853
  %v1113 = vmul.f32 %v470, %v854
  %v1114 = vmul.f32 %v471, %v855
  %v1115 = vmul.f32 %v472, %v856
  %v1116 = vmul.f32 %v473, %v857
  %v1117 = vmul.f32 %v474, %v858
  %v1118 = vmul.f32 %v475, %v859
  %v1119 = vmul.f32 %v476, %v860
  %v1120 = vmul.f32 %v477, %v861
  %v1121 = vmul.f32 %v478, %v862
  %v1122 = vmul.f32 %v479, %v863
  %v1123 = vmul.f32 %v480, %v864
  %v1124 = vmul.f32 %v481, %v865
  %v1125 = vmul.f32 %v482, %v866
  %v1126 = vadd.f32 %v1062, %v1063
  %v1127 = vadd.f32 %v1126, %v1064
  %v1128 = vadd.f32 %v1127, %v1065
  %v1129 = vadd.f32 %v1128, %v1066
  %v1130 = vadd.f32 %v1129, %v1067
  %v1131 = vadd.f32 %v1130, %v1068
  %v1132 = vadd.f32 %v1131, %v1069
  %v1133 = vrot.slane %v1132, 4
  %v1134 = vadd.f32 %v1132, %v1133
  %v1135 = vrot.slane %v1134, 2
  %v1136 = vadd.f32 %v1134, %v1135
  %v1137 = vrot.slane %v1136, 1
  %v1138 = vadd.f32 %v1136, %v1137
  %v1139 = vadd.f32 %v1070, %v1071
  %v1140 = vadd.f32 %v1139, %v1072
  %v1141 = vadd.f32 %v1140, %v1073
  %v1142 = vadd.f32 %v1141, %v1074
  %v1143 = vadd.f32 %v1142, %v1075
  %v1144 = vadd.f32 %v1143, %v1076
  %v1145 = vadd.f32 %v1144, %v1077
  %v1146 = vrot.slane %v1145, 4
  %v1147 = vadd.f32 %v1145, %v1146
  %v1148 = vrot.slane %v1147, 2
  %v1149 = vadd.f32 %v1147, %v1148
  %v1150 = vrot.slane %v1149, 1
  %v1151 = vadd.f32 %v1149, %v1150
  %v1152 = vadd.f32 %v1078, %v1079
  %v1153 = vadd.f32 %v1152, %v1080
  %v1154 = vadd.f32 %v1153, %v1081
  %v1155 = vadd.f32 %v1154, %v1082
  %v1156 = vadd.f32 %v1155, %v1083
  %v1157 = vadd.f32 %v1156, %v1084
  %v1158 = vadd.f32 %v1157, %v1085
  %v1159 = vrot.slane %v1158, 4
  %v1160 = vadd.f32 %v1158, %v1159
  %v1161 = vrot.slane %v1160, 2
  %v1162 = vadd.f32 %v1160, %v1161
  %v1163 = vrot.slane %v1162, 1
  %v1164 = vadd.f32 %v1162, %v1163
  %v1165 = vadd.f32 %v1086, %v1087
  %v1166 = vadd.f32 %v1165, %v1088
  %v1167 = vadd.f32 %v1166, %v1089
  %v1168 = vadd.f32 %v1167, %v1090
  %v1169 = vadd.f32 %v1168, %v1091
  %v1170 = vadd.f32 %v1169, %v1092
  %v1171 = vadd.f32 %v1170, %v1093
  %v1172 = vrot.slane %v1171, 4
  %v1173 = vadd.f32 %v1171, %v1172
  %v1174 = vrot.slane %v1173, 2
  %v1175 = vadd.f32 %v1173, %v1174
  %v1176 = vrot.slane %v1175, 1
  %v1177 = vadd.f32 %v1175, %v1176
  %v1178 = vadd.f32 %v1094, %v1095
  %v1179 = vadd.f32 %v1178, %v1096
  %v1180 = vadd.f32 %v1179, %v1097
  %v1181 = vadd.f32 %v1180, %v1098
  %v1182 = vadd.f32 %v1181, %v1099
  %v1183 = vadd.f32 %v1182, %v1100
  %v1184 = vadd.f32 %v1183, %v1101
  %v1185 = vrot.slane %v1184, 4
  %v1186 = vadd.f32 %v1184, %v1185
  %v1187 = vrot.slane %v1186, 2
  %v1188 = vadd.f32 %v1186, %v1187
  %v1189 = vrot.slane %v1188, 1
  %v1190 = vadd.f32 %v1188, %v1189
  %v1191 = vadd.f32 %v1102, %v1103
  %v1192 = vadd.f32 %v1191, %v1104
  %v1193 = vadd.f32 %v1192, %v1105
  %v1194 = vadd.f32 %v1193, %v1106
  %v1195 = vadd.f32 %v1194, %v1107
  %v1196 = vadd.f32 %v1195, %v1108
  %v1197 = vadd.f32 %v1196, %v1109
  %v1198 = vrot.slane %v1197, 4
  %v1199 = vadd.f32 %v1197, %v1198
  %v1200 = vrot.slane %v1199, 2
  %v1201 = vadd.f32 %v1199, %v1200
  %v1202 = vrot.slane %v1201, 1
  %v1203 = vadd.f32 %v1201, %v1202
  %v1204 = vadd.f32 %v1110, %v1111
  %v1205 = vadd.f32 %v1204, %v1112
  %v1206 = vadd.f32 %v1205, %v1113
  %v1207 = vadd.f32 %v1206, %v1114
  %v1208 = vadd.f32 %v1207, %v1115
  %v1209 = vadd.f32 %v1208, %v1116
  %v1210 = vadd.f32 %v1209, %v1117
  %v1211 = vrot.slane %v1210, 4
  %v1212 = vadd.f32 %v1210, %v1211
  %v1213 = vrot.slane %v1212, 2
  %v1214 = vadd.f32 %v1212, %v1213
  %v1215 = vrot.slane %v1214, 1
  %v1216 = vadd.f32 %v1214, %v1215
  %v1217 = vadd.f32 %v1118, %v1119
  %v1218 = vadd.f32 %v1217, %v1120
  %v1219 = vadd.f32 %v1218, %v1121
  %v1220 = vadd.f32 %v1219, %v1122
  %v1221 = vadd.f32 %v1220, %v1123
  %v1222 = vadd.f32 %v1221, %v1124
  %v1223 = vadd.f32 %v1222, %v1125
  %v1224 = vrot.slane %v1223, 4
  %v1225 = vadd.f32 %v1223, %v1224
  %v1226 = vrot.slane %v1225, 2
  %v1227 = vadd.f32 %v1225, %v1226
  %v1228 = vrot.slane %v1227, 1
  %v1229 = vadd.f32 %v1227, %v1228
  %v1238 = vsel %vm1044, %v1151, %v1138
  %v1239 = vsel %vm1046, %v1164, %v1238
  %v1240 = vsel %vm1048, %v1177, %v1239
  %v1241 = vsel %vm1050, %v1190, %v1240
  %v1242 = vsel %vm1052, %v1203, %v1241
  %v1243 = vsel %vm1054, %v1216, %v1242
  %v1244 = vsel %vm1056, %v1229, %v1243
  %v1246 = vadd.f32 %v1061, %v1244
  %vm1247 = vcmask 7168
  %1248 = vst.msk [vmem:[#allocation3] sm:$0xff] %vm1247, %v1246
  // Predicated region
  $region34: #{early_exit_block.1} parent=0 // pred_check
    %p1249 = pneg %p28
  $region35: #{early_exit_block.1} parent=0 // pred_check_branch
    %1251 = sbr.rel (%p1249) target = $region37
  $region36: #{early_exit_block.1} parent=0 // pred_region
    %v1252 = vld [vmem:[#allocation2] sm:$0xff]
    %v1253 = vld [vmem:[#allocation3] sm:$0xff]
    %1255 = vset.pattern.permute.xlu0 0
    %1256 = vperm.xlu0 %1255, %v1253
    %v1257 = vpop.permute.xlu0 %1256
    %v1259 = vsub.f32 %v1252, %v1257
    %v1260 = vmul.f32 %v1259, 0.015625
    %v1261 = vld [vmem:[%s1] sm:$0x1]
    %v1263 = vlaneseq
    %v1264 = vshrl.u32 %v1263, 7
    %v1265 = vsub.s32 0, %v1264
    %v1266 = vrot.slane %v1261, %v1265
    %v1268 = vmul.f32 %v1260, %v1266
    %v1269 = vld [vmem:[%s2] sm:$0x1]
    %v1271 = vlaneseq
    %v1272 = vshrl.u32 %v1271, 7
    %v1273 = vsub.s32 0, %v1272
    %v1274 = vrot.slane %v1269, %v1273
    %v1276 = vadd.f32 %v1268, %v1274
    %v1277 = vld [vmem:[%s3] sm:$0xff]
    %v1278 = vld [vmem:[%s3 + $0x8] sm:$0xff]
    %v1279 = vld [vmem:[%s3 + $0x10] sm:$0xff]
    %v1280 = vld [vmem:[%s3 + $0x18] sm:$0xff]
    %v1281 = vld [vmem:[%s3 + $0x20] sm:$0xff]
    %v1282 = vld [vmem:[%s3 + $0x28] sm:$0xff]
    %v1283 = vld [vmem:[%s3 + $0x30] sm:$0xff]
    %v1284 = vld [vmem:[%s3 + $0x38] sm:$0xff]
    %v1285 = vld [vmem:[%s3 + $0x40] sm:$0xff]
    %v1286 = vld [vmem:[%s3 + $0x48] sm:$0xff]
    %v1287 = vld [vmem:[%s3 + $0x50] sm:$0xff]
    %v1288 = vld [vmem:[%s3 + $0x58] sm:$0xff]
    %v1289 = vld [vmem:[%s3 + $0x60] sm:$0xff]
    %v1290 = vld [vmem:[%s3 + $0x68] sm:$0xff]
    %v1291 = vld [vmem:[%s3 + $0x70] sm:$0xff]
    %v1292 = vld [vmem:[%s3 + $0x78] sm:$0xff]
    %v1293 = vld [vmem:[%s4] sm:$0x1]
    %v1295 = vlaneseq
    %v1296 = vshrl.u32 %v1295, 7
    %v1297 = vsub.s32 0, %v1296
    %v1298 = vrot.slane %v1293, %v1297
    %1300 = vmatprep.subr.mxu0 0.0
    %1301 = vmatpush1.msra.mxu0 %v1277
    %1302 = vmatprep.subr.mxu0 0.0
    %1303 = vmatpush1.msra.mxu0 %v1278
    %1304 = vmatprep.subr.mxu0 0.0
    %1305 = vmatpush1.msra.mxu0 %v1279
    %1306 = vmatprep.subr.mxu0 0.0
    %1307 = vmatpush1.msra.mxu0 %v1280
    %1308 = vmatprep.subr.mxu0 0.0
    %1309 = vmatpush1.msra.mxu0 %v1281
    %1310 = vmatprep.subr.mxu0 0.0
    %1311 = vmatpush1.msra.mxu0 %v1282
    %1312 = vmatprep.subr.mxu0 0.0
    %1313 = vmatpush1.msra.mxu0 %v1283
    %1314 = vmatprep.subr.mxu0 0.0
    %1315 = vmatpush1.msra.mxu0 %v1284
    %1316 = vmatprep.subr.mxu0 0.0
    %1317 = vmatpush1.msra.mxu0 %v1285
    %1318 = vmatprep.subr.mxu0 0.0
    %1319 = vmatpush1.msra.mxu0 %v1286
    %1320 = vmatprep.subr.mxu0 0.0
    %1321 = vmatpush1.msra.mxu0 %v1287
    %1322 = vmatprep.subr.mxu0 0.0
    %1323 = vmatpush1.msra.mxu0 %v1288
    %1324 = vmatprep.subr.mxu0 0.0
    %1325 = vmatpush1.msra.mxu0 %v1289
    %1326 = vmatprep.subr.mxu0 0.0
    %1327 = vmatpush1.msra.mxu0 %v1290
    %1328 = vmatprep.subr.mxu0 0.0
    %1329 = vmatpush1.msra.mxu0 %v1291
    %1330 = vmatprep.subr.mxu0 0.0
    %1331 = vmatpush1.msra.mxu0 %v1292
    %1332 = vmatprep.subr.mxu0 0.0
    %1333 = vmatpush1.msra.mxu0 0.0
    %1334 = vmatprep.subr.mxu0 0.0
    %1335 = vmatpush1.msra.mxu0 0.0
    %1336 = vmatprep.subr.mxu0 0.0
    %1337 = vmatpush1.msra.mxu0 0.0
    %1338 = vmatprep.subr.mxu0 0.0
    %1339 = vmatpush1.msra.mxu0 0.0
    %1340 = vmatprep.subr.mxu0 0.0
    %1341 = vmatpush1.msra.mxu0 0.0
    %1342 = vmatprep.subr.mxu0 0.0
    %1343 = vmatpush1.msra.mxu0 0.0
    %1344 = vmatprep.subr.mxu0 0.0
    %1345 = vmatpush1.msra.mxu0 0.0
    %1346 = vmatprep.subr.mxu0 0.0
    %1347 = vmatpush1.msra.mxu0 0.0
    %1348 = vmatprep.subr.mxu0 0.0
    %1349 = vmatpush1.msra.mxu0 0.0
    %1350 = vmatprep.subr.mxu0 0.0
    %1351 = vmatpush1.msra.mxu0 0.0
    %1352 = vmatprep.subr.mxu0 0.0
    %1353 = vmatpush1.msra.mxu0 0.0
    %1354 = vmatprep.subr.mxu0 0.0
    %1355 = vmatpush1.msra.mxu0 0.0
    %1356 = vmatprep.subr.mxu0 0.0
    %1357 = vmatpush1.msra.mxu0 0.0
    %1358 = vmatprep.subr.mxu0 0.0
    %1359 = vmatpush1.msra.mxu0 0.0
    %1360 = vmatprep.subr.mxu0 0.0
    %1361 = vmatpush1.msra.mxu0 0.0
    %1362 = vmatprep.subr.mxu0 0.0
    %1363 = vmatpush1.msra.mxu0 0.0
    %1364 = vmatprep.mubr.f32.mxu0 0.0
    %1365 = vmatmul.mubr.f32.gmra.mrb[0].mxu0 %v1276
    %v1366 = vpop.f32.mrb[0].mxu0
    %v1367 = vadd.f32 %v1298, %v1366
    %v1368 = vpop.f32.mrb[0].mxu0
    %1369 = vdwg.mxu0
    %v1370 = vmax.f32 %v1367, 0.0
    %v1371 = vld [vmem:[%s5] sm:$0xff]
    %v1372 = vld [vmem:[%s5 + $0x8] sm:$0xff]
    %v1373 = vld [vmem:[%s5 + $0x10] sm:$0xff]
    %v1374 = vld [vmem:[%s5 + $0x18] sm:$0xff]
    %v1375 = vld [vmem:[%s5 + $0x20] sm:$0xff]
    %v1376 = vld [vmem:[%s5 + $0x28] sm:$0xff]
    %v1377 = vld [vmem:[%s5 + $0x30] sm:$0xff]
    %v1378 = vld [vmem:[%s5 + $0x38] sm:$0xff]
    %v1379 = vld [vmem:[%s5 + $0x40] sm:$0xff]
    %v1380 = vld [vmem:[%s5 + $0x48] sm:$0xff]
    %v1381 = vld [vmem:[%s5 + $0x50] sm:$0xff]
    %v1382 = vld [vmem:[%s5 + $0x58] sm:$0xff]
    %v1383 = vld [vmem:[%s5 + $0x60] sm:$0xff]
    %v1384 = vld [vmem:[%s5 + $0x68] sm:$0xff]
    %v1385 = vld [vmem:[%s5 + $0x70] sm:$0xff]
    %v1386 = vld [vmem:[%s5 + $0x78] sm:$0xff]
    %v1387 = vld [vmem:[%s6] sm:$0x1]
    %v1389 = vlaneseq
    %v1390 = vshrl.u32 %v1389, 7
    %v1391 = vsub.s32 0, %v1390
    %v1392 = vrot.slane %v1387, %v1391
    %1394 = vmatprep.subr.mxu0 0.0
    %1395 = vmatpush1.msra.mxu0 %v1371
    %1396 = vmatprep.subr.mxu0 0.0
    %1397 = vmatpush1.msra.mxu0 %v1372
    %1398 = vmatprep.subr.mxu0 0.0
    %1399 = vmatpush1.msra.mxu0 %v1373
    %1400 = vmatprep.subr.mxu0 0.0
    %1401 = vmatpush1.msra.mxu0 %v1374
    %1402 = vmatprep.subr.mxu0 0.0
    %1403 = vmatpush1.msra.mxu0 %v1375
    %1404 = vmatprep.subr.mxu0 0.0
    %1405 = vmatpush1.msra.mxu0 %v1376
    %1406 = vmatprep.subr.mxu0 0.0
    %1407 = vmatpush1.msra.mxu0 %v1377
    %1408 = vmatprep.subr.mxu0 0.0
    %1409 = vmatpush1.msra.mxu0 %v1378
    %1410 = vmatprep.subr.mxu0 0.0
    %1411 = vmatpush1.msra.mxu0 %v1379
    %1412 = vmatprep.subr.mxu0 0.0
    %1413 = vmatpush1.msra.mxu0 %v1380
    %1414 = vmatprep.subr.mxu0 0.0
    %1415 = vmatpush1.msra.mxu0 %v1381
    %1416 = vmatprep.subr.mxu0 0.0
    %1417 = vmatpush1.msra.mxu0 %v1382
    %1418 = vmatprep.subr.mxu0 0.0
    %1419 = vmatpush1.msra.mxu0 %v1383
    %1420 = vmatprep.subr.mxu0 0.0
    %1421 = vmatpush1.msra.mxu0 %v1384
    %1422 = vmatprep.subr.mxu0 0.0
    %1423 = vmatpush1.msra.mxu0 %v1385
    %1424 = vmatprep.subr.mxu0 0.0
    %1425 = vmatpush1.msra.mxu0 %v1386
    %1426 = vmatprep.subr.mxu0 0.0
    %1427 = vmatpush1.msra.mxu0 0.0
    %1428 = vmatprep.subr.mxu0 0.0
    %1429 = vmatpush1.msra.mxu0 0.0
    %1430 = vmatprep.subr.mxu0 0.0
    %1431 = vmatpush1.msra.mxu0 0.0
    %1432 = vmatprep.subr.mxu0 0.0
    %1433 = vmatpush1.msra.mxu0 0.0
    %1434 = vmatprep.subr.mxu0 0.0
    %1435 = vmatpush1.msra.mxu0 0.0
    %1436 = vmatprep.subr.mxu0 0.0
    %1437 = vmatpush1.msra.mxu0 0.0
    %1438 = vmatprep.subr.mxu0 0.0
    %1439 = vmatpush1.msra.mxu0 0.0
    %1440 = vmatprep.subr.mxu0 0.0
    %1441 = vmatpush1.msra.mxu0 0.0
    %1442 = vmatprep.subr.mxu0 0.0
    %1443 = vmatpush1.msra.mxu0 0.0
    %1444 = vmatprep.subr.mxu0 0.0
    %1445 = vmatpush1.msra.mxu0 0.0
    %1446 = vmatprep.subr.mxu0 0.0
    %1447 = vmatpush1.msra.mxu0 0.0
    %1448 = vmatprep.subr.mxu0 0.0
    %1449 = vmatpush1.msra.mxu0 0.0
    %1450 = vmatprep.subr.mxu0 0.0
    %1451 = vmatpush1.msra.mxu0 0.0
    %1452 = vmatprep.subr.mxu0 0.0
    %1453 = vmatpush1.msra.mxu0 0.0
    %1454 = vmatprep.subr.mxu0 0.0
    %1455 = vmatpush1.msra.mxu0 0.0
    %1456 = vmatprep.subr.mxu0 0.0
    %1457 = vmatpush1.msra.mxu0 0.0
    %1458 = vmatprep.mubr.f32.mxu0 0.0
    %1459 = vmatmul.mubr.f32.gmra.mrb[0].mxu0 %v1370
    %v1460 = vpop.f32.mrb[0].mxu0
    %v1461 = vadd.f32 %v1392, %v1460
    %v1462 = vpop.f32.mrb[0].mxu0
    %1463 = vdwg.mxu0
    %1464 = vst [vmem:[%s7] sm:$0xff] %v1461
    %v1465 = vlaneseq
    %v1466 = vand.u32 %v1465, 127
    %vm1467 = vcmp.lt.s32.totalorder %v1466, 10
    %v1468 = vsel %vm1467, %v1461, -inf
    %1469 = vmax.xlane.f32.xlu0 %v1468
    %v1470 = vpop.xlane.xlu0 %1469
    %v1471 = vsub.f32 %v1468, %v1470
    %v1472 = vmul.f32 %v1471, 1.442695
    %v1473 = vpow.pop %v1472
    %1474 = vadd.xlane.f32.xlu0 %v1473
    %v1475 = vpop.xlane.xlu0 %1474
    %v1476 = vrcp.pop %v1475
    %v1477 = vmul.f32 %v1473, %v1476
    %1478 = vst [vmem:[%s8] sm:$0xff] %v1477
  $region37: #{early_exit_block.1} parent=0 // pred_fallthru
    _
  // Predicated region
  $region38: #{early_exit_block.1} parent=0 // pred_check
    _
  $region39: #{early_exit_block.1} parent=0 // pred_check_branch
    %1480 = sbr.rel (0) target = $region41
  $region40: #{early_exit_block.1} parent=0 // pred_region
    _
  $region41: #{early_exit_block.1} parent=0 // pred_fallthru
    _
  // Predicated region
  $region42: #{early_exit_block.1} parent=0 // pred_check
    _
  $region43: #{early_exit_block.1} parent=0 // pred_check_branch
    %1482 = sbr.rel (0) target = $region45
  $region44: #{early_exit_block.1} parent=0 // pred_region
    _
  $region45: #{early_exit_block.1} parent=0 // pred_fallthru
    _
  // Predicated region
  $region46: #{early_exit_block.1} parent=0 // pred_check
    _
  $region47: #{early_exit_block.1} parent=0 // pred_check_branch
    %1484 = sbr.rel (0) target = $region49
  $region48: #{early_exit_block.1} parent=0 // pred_region
    _
  $region49: #{early_exit_block.1} parent=0 // pred_fallthru
    _
  // Predicated region
  $region50: #{early_exit_block.1} parent=0 // pred_check
    _
  $region51: #{early_exit_block.1} parent=0 // pred_check_branch
    %1486 = sbr.rel (0) target = $region53
  $region52: #{early_exit_block.1} parent=0 // pred_region
    _
  $region53: #{early_exit_block.1} parent=0 // pred_fallthru
    _

</llo_original>
